<compile_context>
chip_gen: v5e
topology: v5e:2x2
jax: 0.10.0
libtpu: 0.0.40
codegen_flags: <defaults>
</compile_context>

<pallas_src>
import jax
import jax.numpy as jnp
import numpy as np
from jax.experimental import pallas as pl
from jax.experimental.pallas import tpu as pltpu

# problem sizes (small, consistent with the module's forward)
N = 2         # batch (z.shape[0])
D = 8         # latent dim
C = 4         # image channels
H = W = 16    # spatial
K = 3         # conv kernel size
B_CHUNK = 1   # wrapper chunk size `b`

HW = H * W            # 256 lanes per channel row (lane-dense)
LPAD = W + 1          # 17 zero columns on the left of each flattened row
PADW = LPAD + HW      # 273

# Nonzero taps of a 3x3 PixelCNN mask 'A' (strictly causal) and their lane
# offsets in the left-zero-padded flattened row: off = LPAD + (kh-1)*W + (kw-1)
TAPS = ((0, 0), (0, 1), (0, 2), (1, 0))
NTAPS = len(TAPS)
TAP_OFF = tuple(LPAD + (kh - 1) * W + (kw - 1) for kh, kw in TAPS)  # (0, 1, 2, 16)


# ---------------- fused kernel: decoder + masked conv + ReLU ----------------
def fused_kernel(z_ref, cw_ref, cb_ref, dwp_ref, dbp_ref, cm_ref, o_ref, xs_ref):
    # z_ref  : SMEM (N, D)             latent codes (scalar reads)
    # cw_ref : SMEM (C*C*NTAPS,)       mask-'A' conv weights, [out, in, tap] flat
    # cb_ref : SMEM (C,)               conv bias
    # dwp_ref: VMEM (D, C, PADW)       decoder weight, lane-dense, 17-zero left pad
    # dbp_ref: VMEM (C, PADW)          decoder bias, same padding
    # cm_ref : VMEM (NTAPS, 1, HW)     per-tap column-validity masks (0/1 floats)
    # o_ref  : VMEM (N, C, HW)         lane-dense output
    # xs_ref : VMEM scratch (C, PADW)  decoded (tanh) padded image of one sample
    n = z_ref.shape[0]

    # per-tap column masks, loaded once for the whole batch
    cmask = [cm_ref[t] for t in range(NTAPS)]            # each (1, HW)

    for i in range(n):
        # ---- decoder: tanh(z_i @ W + b) as D broadcast-FMAs on the VPU,
        #      lane-dense; the zero left border survives because the padded
        #      weight/bias columns are zero and tanh(0) = 0. ----
        x = dbp_ref[...]                                  # (C, PADW)
        for d in range(D):
            x = x + z_ref[i, d] * dwp_ref[d]
        xs_ref[...] = jnp.tanh(x)

        # ---- PixelCNN masked 3x3 conv ('A' mask -> 4 taps) + bias + ReLU ----
        acc = [jnp.full((1, HW), cb_ref[o], jnp.float32) for o in range(C)]
        for ci in range(C):
            for t in range(NTAPS):
                # shifted tap row: loaded + masked once, reused by all 4
                # output channels (hoisted out of the o-loop)
                row = xs_ref[ci:ci + 1, TAP_OFF[t]:TAP_OFF[t] + HW] * cmask[t]
                for o in range(C):
                    acc[o] = acc[o] + cw_ref[(o * C + ci) * NTAPS + t] * row
        for o in range(C):
            o_ref[i, o:o + 1, :] = jnp.maximum(acc[o], 0.0)   # full-lane store


# ---------------- one-time parameter preprocessing (module-init time) -------
def prepare_params(dec_w, dec_b, conv_w_masked, conv_b):
    # decoder weights/bias in lane-dense layout with a 17-zero left border
    dwp = jnp.pad(dec_w.reshape(D, C, HW), ((0, 0), (0, 0), (LPAD, 0)))
    dbp = jnp.pad(dec_b.reshape(C, HW), ((0, 0), (LPAD, 0)))
    # conv weights at the 4 nonzero mask-'A' taps, flattened [out, in, tap]
    cw_taps = jnp.stack([conv_w_masked[:, :, kh, kw] for (kh, kw) in TAPS],
                        axis=-1).reshape(-1)
    # per-tap column-validity masks for the flattened (row-major) image:
    # kw==0 taps must not read column -1, kw==2 taps must not read column W.
    col = np.arange(HW, dtype=np.int64) % W
    m_left = (col >= 1).astype(np.float32)
    m_right = (col <= W - 2).astype(np.float32)
    ones = np.ones(HW, np.float32)
    sel = {0: m_left, 1: ones, 2: m_right}
    cmask = jnp.asarray(np.stack([sel[kw] for (_, kw) in TAPS])[:, None, :])
    return dwp, dbp, cw_taps, jnp.asarray(conv_b), cmask


# ---------------- Wrapper.forward equivalent ----------------
def wrapper_forward(z, params, b=1):
    dwp, dbp, cw_taps, conv_b, cmask = params
    n = z.shape[0]
    # mirrors the PyTorch chunking assert; the chunks are independent samples,
    # so processing the whole batch in one fused kernel is equivalent.
    assert (n // b) * b == n

    x = pl.pallas_call(
        fused_kernel,
        out_shape=jax.ShapeDtypeStruct((n, C, HW), jnp.float32),
        in_specs=[
            pl.BlockSpec(memory_space=pltpu.MemorySpace.SMEM),   # z
            pl.BlockSpec(memory_space=pltpu.MemorySpace.SMEM),   # conv tap weights
            pl.BlockSpec(memory_space=pltpu.MemorySpace.SMEM),   # conv bias
            pl.BlockSpec(memory_space=pltpu.MemorySpace.VMEM),   # dec W (padded)
            pl.BlockSpec(memory_space=pltpu.MemorySpace.VMEM),   # dec b (padded)
            pl.BlockSpec(memory_space=pltpu.MemorySpace.VMEM),   # column masks
        ],
        out_specs=pl.BlockSpec(memory_space=pltpu.MemorySpace.VMEM),
        scratch_shapes=[pltpu.VMEM((C, PADW), jnp.float32)],
    )(z, cw_taps, conv_b, dwp, dbp, cmask)

    # pure metadata reshape back to image layout
    return x.reshape(n, C, H, W), jnp.asarray(0.75, dtype=jnp.float32)


# ---------------- pure-JAX reference for verification ----------------
def reference(z, dec_w, dec_b, conv_w_masked, conv_b):
    x = jnp.tanh(z @ dec_w + dec_b).reshape(z.shape[0], C, H, W)
    y = jax.lax.conv_general_dilated(
        x, conv_w_masked, (1, 1), 'SAME',
        dimension_numbers=('NCHW', 'OIHW', 'NCHW'))
    return jnp.maximum(y + conv_b[None, :, None, None], 0.0)


if __name__ == "__main__":
    key = jax.random.PRNGKey(0)
    kz, k1, k2, k3, k4 = jax.random.split(key, 5)

    # deterministic synthetic parameters
    dec_w = jax.random.normal(k1, (D, C * H * W), jnp.float32) * 0.1
    dec_b = jax.random.normal(k2, (1, C * H * W), jnp.float32) * 0.1
    conv_w = jax.random.normal(k3, (C, C, K, K), jnp.float32) * 0.1
    conv_b = jax.random.normal(k4, (C,), jnp.float32) * 0.1

    # PixelCNN mask type 'A': only strictly-causal taps
    mask = jnp.ones((K, K), jnp.float32)
    mask = mask.at[1, 1:].set(0.0)
    mask = mask.at[2:, :].set(0.0)
    conv_w_masked = conv_w * mask[None, None, :, :]

    z = jax.random.normal(kz, (N, D), jnp.float32)

    params = prepare_params(dec_w, dec_b, conv_w_masked, conv_b)
    out, scalar = wrapper_forward(z, params, b=B_CHUNK)
    out = jax.block_until_ready(out)
    scalar = jax.block_until_ready(scalar)

    ref = reference(z, dec_w, dec_b, conv_w_masked, conv_b)
    np.testing.assert_allclose(np.asarray(out), np.asarray(ref),
                               rtol=1e-5, atol=1e-5)
    assert out.shape == (N, C, H, W)
    assert float(scalar) == 0.75

    # TODO(synk): the torch `print('x1'/'x2', ...)` debug statements are omitted.
    print("KERNEL_OK")
</pallas_src>

<mosaic_0001>
module attributes {stable_mosaic.version = 11 : i64} {
  func.func @fused_kernel(%arg0: memref<2x8xf32, #tpu.memory_space<smem>>, %arg1: memref<64xf32, #tpu.memory_space<smem>>, %arg2: memref<4xf32, #tpu.memory_space<smem>>, %arg3: memref<8x4x273xf32, #tpu.memory_space<vmem>>, %arg4: memref<4x273xf32, #tpu.memory_space<vmem>>, %arg5: memref<4x1x256xf32, #tpu.memory_space<vmem>>, %arg6: memref<2x4x256xf32, #tpu.memory_space<vmem>>, %arg7: memref<4x273xf32, #tpu.memory_space<vmem>>) attributes {dimension_semantics = [], scalar_prefetch = 0 : i64, scratch_operands = 1 : i64, tpu.core_type = #tpu.core_type<tc>} {
    %c0 = arith.constant 0 : index
    %c0_0 = arith.constant 0 : index
    %c0_1 = arith.constant 0 : index
    %0 = vector.load %arg5[%c0, %c0_0, %c0_1] : memref<4x1x256xf32, #tpu.memory_space<vmem>>, vector<1x1x256xf32>
    %1 = vector.shape_cast %0 : vector<1x1x256xf32> to vector<1x256xf32>
    %c1 = arith.constant 1 : index
    %c0_2 = arith.constant 0 : index
    %c0_3 = arith.constant 0 : index
    %2 = vector.load %arg5[%c1, %c0_2, %c0_3] : memref<4x1x256xf32, #tpu.memory_space<vmem>>, vector<1x1x256xf32>
    %3 = vector.shape_cast %2 : vector<1x1x256xf32> to vector<1x256xf32>
    %c2 = arith.constant 2 : index
    %c0_4 = arith.constant 0 : index
    %c0_5 = arith.constant 0 : index
    %4 = vector.load %arg5[%c2, %c0_4, %c0_5] : memref<4x1x256xf32, #tpu.memory_space<vmem>>, vector<1x1x256xf32>
    %5 = vector.shape_cast %4 : vector<1x1x256xf32> to vector<1x256xf32>
    %c3 = arith.constant 3 : index
    %c0_6 = arith.constant 0 : index
    %c0_7 = arith.constant 0 : index
    %6 = vector.load %arg5[%c3, %c0_6, %c0_7] : memref<4x1x256xf32, #tpu.memory_space<vmem>>, vector<1x1x256xf32>
    %7 = vector.shape_cast %6 : vector<1x1x256xf32> to vector<1x256xf32>
    %c0_8 = arith.constant 0 : index
    %c0_9 = arith.constant 0 : index
    %8 = vector.load %arg4[%c0_8, %c0_9] : memref<4x273xf32, #tpu.memory_space<vmem>>, vector<4x273xf32>
    %c0_10 = arith.constant 0 : index
    %c0_11 = arith.constant 0 : index
    %9 = memref.load %arg0[%c0_10, %c0_11] : memref<2x8xf32, #tpu.memory_space<smem>>
    %c0_12 = arith.constant 0 : index
    %c0_13 = arith.constant 0 : index
    %c0_14 = arith.constant 0 : index
    %10 = vector.load %arg3[%c0_12, %c0_13, %c0_14] : memref<8x4x273xf32, #tpu.memory_space<vmem>>, vector<1x4x273xf32>
    %11 = vector.shape_cast %10 : vector<1x4x273xf32> to vector<4x273xf32>
    %12 = vector.broadcast %9 : f32 to vector<4x273xf32>
    %13 = arith.mulf %12, %11 : vector<4x273xf32>
    %14 = arith.addf %8, %13 : vector<4x273xf32>
    %c0_15 = arith.constant 0 : index
    %c1_16 = arith.constant 1 : index
    %15 = memref.load %arg0[%c0_15, %c1_16] : memref<2x8xf32, #tpu.memory_space<smem>>
    %c1_17 = arith.constant 1 : index
    %c0_18 = arith.constant 0 : index
    %c0_19 = arith.constant 0 : index
    %16 = vector.load %arg3[%c1_17, %c0_18, %c0_19] : memref<8x4x273xf32, #tpu.memory_space<vmem>>, vector<1x4x273xf32>
    %17 = vector.shape_cast %16 : vector<1x4x273xf32> to vector<4x273xf32>
    %18 = vector.broadcast %15 : f32 to vector<4x273xf32>
    %19 = arith.mulf %18, %17 : vector<4x273xf32>
    %20 = arith.addf %14, %19 : vector<4x273xf32>
    %c0_20 = arith.constant 0 : index
    %c2_21 = arith.constant 2 : index
    %21 = memref.load %arg0[%c0_20, %c2_21] : memref<2x8xf32, #tpu.memory_space<smem>>
    %c2_22 = arith.constant 2 : index
    %c0_23 = arith.constant 0 : index
    %c0_24 = arith.constant 0 : index
    %22 = vector.load %arg3[%c2_22, %c0_23, %c0_24] : memref<8x4x273xf32, #tpu.memory_space<vmem>>, vector<1x4x273xf32>
    %23 = vector.shape_cast %22 : vector<1x4x273xf32> to vector<4x273xf32>
    %24 = vector.broadcast %21 : f32 to vector<4x273xf32>
    %25 = arith.mulf %24, %23 : vector<4x273xf32>
    %26 = arith.addf %20, %25 : vector<4x273xf32>
    %c0_25 = arith.constant 0 : index
    %c3_26 = arith.constant 3 : index
    %27 = memref.load %arg0[%c0_25, %c3_26] : memref<2x8xf32, #tpu.memory_space<smem>>
    %c3_27 = arith.constant 3 : index
    %c0_28 = arith.constant 0 : index
    %c0_29 = arith.constant 0 : index
    %28 = vector.load %arg3[%c3_27, %c0_28, %c0_29] : memref<8x4x273xf32, #tpu.memory_space<vmem>>, vector<1x4x273xf32>
    %29 = vector.shape_cast %28 : vector<1x4x273xf32> to vector<4x273xf32>
    %30 = vector.broadcast %27 : f32 to vector<4x273xf32>
    %31 = arith.mulf %30, %29 : vector<4x273xf32>
    %32 = arith.addf %26, %31 : vector<4x273xf32>
    %c0_30 = arith.constant 0 : index
    %c4 = arith.constant 4 : index
    %33 = memref.load %arg0[%c0_30, %c4] : memref<2x8xf32, #tpu.memory_space<smem>>
    %c4_31 = arith.constant 4 : index
    %c0_32 = arith.constant 0 : index
    %c0_33 = arith.constant 0 : index
    %34 = vector.load %arg3[%c4_31, %c0_32, %c0_33] : memref<8x4x273xf32, #tpu.memory_space<vmem>>, vector<1x4x273xf32>
    %35 = vector.shape_cast %34 : vector<1x4x273xf32> to vector<4x273xf32>
    %36 = vector.broadcast %33 : f32 to vector<4x273xf32>
    %37 = arith.mulf %36, %35 : vector<4x273xf32>
    %38 = arith.addf %32, %37 : vector<4x273xf32>
    %c0_34 = arith.constant 0 : index
    %c5 = arith.constant 5 : index
    %39 = memref.load %arg0[%c0_34, %c5] : memref<2x8xf32, #tpu.memory_space<smem>>
    %c5_35 = arith.constant 5 : index
    %c0_36 = arith.constant 0 : index
    %c0_37 = arith.constant 0 : index
    %40 = vector.load %arg3[%c5_35, %c0_36, %c0_37] : memref<8x4x273xf32, #tpu.memory_space<vmem>>, vector<1x4x273xf32>
    %41 = vector.shape_cast %40 : vector<1x4x273xf32> to vector<4x273xf32>
    %42 = vector.broadcast %39 : f32 to vector<4x273xf32>
    %43 = arith.mulf %42, %41 : vector<4x273xf32>
    %44 = arith.addf %38, %43 : vector<4x273xf32>
    %c0_38 = arith.constant 0 : index
    %c6 = arith.constant 6 : index
    %45 = memref.load %arg0[%c0_38, %c6] : memref<2x8xf32, #tpu.memory_space<smem>>
    %c6_39 = arith.constant 6 : index
    %c0_40 = arith.constant 0 : index
    %c0_41 = arith.constant 0 : index
    %46 = vector.load %arg3[%c6_39, %c0_40, %c0_41] : memref<8x4x273xf32, #tpu.memory_space<vmem>>, vector<1x4x273xf32>
    %47 = vector.shape_cast %46 : vector<1x4x273xf32> to vector<4x273xf32>
    %48 = vector.broadcast %45 : f32 to vector<4x273xf32>
    %49 = arith.mulf %48, %47 : vector<4x273xf32>
    %50 = arith.addf %44, %49 : vector<4x273xf32>
    %c0_42 = arith.constant 0 : index
    %c7 = arith.constant 7 : index
    %51 = memref.load %arg0[%c0_42, %c7] : memref<2x8xf32, #tpu.memory_space<smem>>
    %c7_43 = arith.constant 7 : index
    %c0_44 = arith.constant 0 : index
    %c0_45 = arith.constant 0 : index
    %52 = vector.load %arg3[%c7_43, %c0_44, %c0_45] : memref<8x4x273xf32, #tpu.memory_space<vmem>>, vector<1x4x273xf32>
    %53 = vector.shape_cast %52 : vector<1x4x273xf32> to vector<4x273xf32>
    %54 = vector.broadcast %51 : f32 to vector<4x273xf32>
    %55 = arith.mulf %54, %53 : vector<4x273xf32>
    %56 = arith.addf %50, %55 : vector<4x273xf32>
    %57 = math.tanh %56 : vector<4x273xf32>
    %c0_46 = arith.constant 0 : index
    %c0_47 = arith.constant 0 : index
    %58 = vector.load %arg7[%c0_46, %c0_47] : memref<4x273xf32, #tpu.memory_space<vmem>>, vector<4x273xf32>
    tpu.vector_store %arg7[%c0_46, %c0_47], %57 {strides = array<i32>} : memref<4x273xf32, #tpu.memory_space<vmem>>, vector<4x273xf32>,
    %c0_48 = arith.constant 0 : index
    %59 = memref.load %arg2[%c0_48] : memref<4xf32, #tpu.memory_space<smem>>
    %60 = vector.broadcast %59 : f32 to vector<1x256xf32>
    %c1_49 = arith.constant 1 : index
    %61 = memref.load %arg2[%c1_49] : memref<4xf32, #tpu.memory_space<smem>>
    %62 = vector.broadcast %61 : f32 to vector<1x256xf32>
    %c2_50 = arith.constant 2 : index
    %63 = memref.load %arg2[%c2_50] : memref<4xf32, #tpu.memory_space<smem>>
    %64 = vector.broadcast %63 : f32 to vector<1x256xf32>
    %c3_51 = arith.constant 3 : index
    %65 = memref.load %arg2[%c3_51] : memref<4xf32, #tpu.memory_space<smem>>
    %66 = vector.broadcast %65 : f32 to vector<1x256xf32>
    %c0_52 = arith.constant 0 : index
    %c0_53 = arith.constant 0 : index
    %67 = vector.load %arg7[%c0_52, %c0_53] : memref<4x273xf32, #tpu.memory_space<vmem>>, vector<1x256xf32>
    %68 = arith.mulf %67, %1 : vector<1x256xf32>
    %c0_54 = arith.constant 0 : index
    %69 = memref.load %arg1[%c0_54] : memref<64xf32, #tpu.memory_space<smem>>
    %70 = vector.broadcast %69 : f32 to vector<1x256xf32>
    %71 = arith.mulf %70, %68 : vector<1x256xf32>
    %72 = arith.addf %60, %71 : vector<1x256xf32>
    %c16 = arith.constant 16 : index
    %73 = memref.load %arg1[%c16] : memref<64xf32, #tpu.memory_space<smem>>
    %74 = vector.broadcast %73 : f32 to vector<1x256xf32>
    %75 = arith.mulf %74, %68 : vector<1x256xf32>
    %76 = arith.addf %62, %75 : vector<1x256xf32>
    %c32 = arith.constant 32 : index
    %77 = memref.load %arg1[%c32] : memref<64xf32, #tpu.memory_space<smem>>
    %78 = vector.broadcast %77 : f32 to vector<1x256xf32>
    %79 = arith.mulf %78, %68 : vector<1x256xf32>
    %80 = arith.addf %64, %79 : vector<1x256xf32>
    %c48 = arith.constant 48 : index
    %81 = memref.load %arg1[%c48] : memref<64xf32, #tpu.memory_space<smem>>
    %82 = vector.broadcast %81 : f32 to vector<1x256xf32>
    %83 = arith.mulf %82, %68 : vector<1x256xf32>
    %84 = arith.addf %66, %83 : vector<1x256xf32>
    %c0_55 = arith.constant 0 : index
    %c1_56 = arith.constant 1 : index
    %85 = vector.load %arg7[%c0_55, %c1_56] : memref<4x273xf32, #tpu.memory_space<vmem>>, vector<1x256xf32>
    %86 = arith.mulf %85, %3 : vector<1x256xf32>
    %c1_57 = arith.constant 1 : index
    %87 = memref.load %arg1[%c1_57] : memref<64xf32, #tpu.memory_space<smem>>
    %88 = vector.broadcast %87 : f32 to vector<1x256xf32>
    %89 = arith.mulf %88, %86 : vector<1x256xf32>
    %90 = arith.addf %72, %89 : vector<1x256xf32>
    %c17 = arith.constant 17 : index
    %91 = memref.load %arg1[%c17] : memref<64xf32, #tpu.memory_space<smem>>
    %92 = vector.broadcast %91 : f32 to vector<1x256xf32>
    %93 = arith.mulf %92, %86 : vector<1x256xf32>
    %94 = arith.addf %76, %93 : vector<1x256xf32>
    %c33 = arith.constant 33 : index
    %95 = memref.load %arg1[%c33] : memref<64xf32, #tpu.memory_space<smem>>
    %96 = vector.broadcast %95 : f32 to vector<1x256xf32>
    %97 = arith.mulf %96, %86 : vector<1x256xf32>
    %98 = arith.addf %80, %97 : vector<1x256xf32>
    %c49 = arith.constant 49 : index
    %99 = memref.load %arg1[%c49] : memref<64xf32, #tpu.memory_space<smem>>
    %100 = vector.broadcast %99 : f32 to vector<1x256xf32>
    %101 = arith.mulf %100, %86 : vector<1x256xf32>
    %102 = arith.addf %84, %101 : vector<1x256xf32>
    %c0_58 = arith.constant 0 : index
    %c2_59 = arith.constant 2 : index
    %103 = vector.load %arg7[%c0_58, %c2_59] : memref<4x273xf32, #tpu.memory_space<vmem>>, vector<1x256xf32>
    %104 = arith.mulf %103, %5 : vector<1x256xf32>
    %c2_60 = arith.constant 2 : index
    %105 = memref.load %arg1[%c2_60] : memref<64xf32, #tpu.memory_space<smem>>
    %106 = vector.broadcast %105 : f32 to vector<1x256xf32>
    %107 = arith.mulf %106, %104 : vector<1x256xf32>
    %108 = arith.addf %90, %107 : vector<1x256xf32>
    %c18 = arith.constant 18 : index
    %109 = memref.load %arg1[%c18] : memref<64xf32, #tpu.memory_space<smem>>
    %110 = vector.broadcast %109 : f32 to vector<1x256xf32>
    %111 = arith.mulf %110, %104 : vector<1x256xf32>
    %112 = arith.addf %94, %111 : vector<1x256xf32>
    %c34 = arith.constant 34 : index
    %113 = memref.load %arg1[%c34] : memref<64xf32, #tpu.memory_space<smem>>
    %114 = vector.broadcast %113 : f32 to vector<1x256xf32>
    %115 = arith.mulf %114, %104 : vector<1x256xf32>
    %116 = arith.addf %98, %115 : vector<1x256xf32>
    %c50 = arith.constant 50 : index
    %117 = memref.load %arg1[%c50] : memref<64xf32, #tpu.memory_space<smem>>
    %118 = vector.broadcast %117 : f32 to vector<1x256xf32>
    %119 = arith.mulf %118, %104 : vector<1x256xf32>
    %120 = arith.addf %102, %119 : vector<1x256xf32>
    %c0_61 = arith.constant 0 : index
    %c16_62 = arith.constant 16 : index
    %121 = vector.load %arg7[%c0_61, %c16_62] : memref<4x273xf32, #tpu.memory_space<vmem>>, vector<1x256xf32>
    %122 = arith.mulf %121, %7 : vector<1x256xf32>
    %c3_63 = arith.constant 3 : index
    %123 = memref.load %arg1[%c3_63] : memref<64xf32, #tpu.memory_space<smem>>
    %124 = vector.broadcast %123 : f32 to vector<1x256xf32>
    %125 = arith.mulf %124, %122 : vector<1x256xf32>
    %126 = arith.addf %108, %125 : vector<1x256xf32>
    %c19 = arith.constant 19 : index
    %127 = memref.load %arg1[%c19] : memref<64xf32, #tpu.memory_space<smem>>
    %128 = vector.broadcast %127 : f32 to vector<1x256xf32>
    %129 = arith.mulf %128, %122 : vector<1x256xf32>
    %130 = arith.addf %112, %129 : vector<1x256xf32>
    %c35 = arith.constant 35 : index
    %131 = memref.load %arg1[%c35] : memref<64xf32, #tpu.memory_space<smem>>
    %132 = vector.broadcast %131 : f32 to vector<1x256xf32>
    %133 = arith.mulf %132, %122 : vector<1x256xf32>
    %134 = arith.addf %116, %133 : vector<1x256xf32>
    %c51 = arith.constant 51 : index
    %135 = memref.load %arg1[%c51] : memref<64xf32, #tpu.memory_space<smem>>
    %136 = vector.broadcast %135 : f32 to vector<1x256xf32>
    %137 = arith.mulf %136, %122 : vector<1x256xf32>
    %138 = arith.addf %120, %137 : vector<1x256xf32>
    %c1_64 = arith.constant 1 : index
    %c0_65 = arith.constant 0 : index
    %139 = vector.load %arg7[%c1_64, %c0_65] : memref<4x273xf32, #tpu.memory_space<vmem>>, vector<1x256xf32>
    %140 = arith.mulf %139, %1 : vector<1x256xf32>
    %c4_66 = arith.constant 4 : index
    %141 = memref.load %arg1[%c4_66] : memref<64xf32, #tpu.memory_space<smem>>
    %142 = vector.broadcast %141 : f32 to vector<1x256xf32>
    %143 = arith.mulf %142, %140 : vector<1x256xf32>
    %144 = arith.addf %126, %143 : vector<1x256xf32>
    %c20 = arith.constant 20 : index
    %145 = memref.load %arg1[%c20] : memref<64xf32, #tpu.memory_space<smem>>
    %146 = vector.broadcast %145 : f32 to vector<1x256xf32>
    %147 = arith.mulf %146, %140 : vector<1x256xf32>
    %148 = arith.addf %130, %147 : vector<1x256xf32>
    %c36 = arith.constant 36 : index
    %149 = memref.load %arg1[%c36] : memref<64xf32, #tpu.memory_space<smem>>
    %150 = vector.broadcast %149 : f32 to vector<1x256xf32>
    %151 = arith.mulf %150, %140 : vector<1x256xf32>
    %152 = arith.addf %134, %151 : vector<1x256xf32>
    %c52 = arith.constant 52 : index
    %153 = memref.load %arg1[%c52] : memref<64xf32, #tpu.memory_space<smem>>
    %154 = vector.broadcast %153 : f32 to vector<1x256xf32>
    %155 = arith.mulf %154, %140 : vector<1x256xf32>
    %156 = arith.addf %138, %155 : vector<1x256xf32>
    %c1_67 = arith.constant 1 : index
    %c1_68 = arith.constant 1 : index
    %157 = vector.load %arg7[%c1_67, %c1_68] : memref<4x273xf32, #tpu.memory_space<vmem>>, vector<1x256xf32>
    %158 = arith.mulf %157, %3 : vector<1x256xf32>
    %c5_69 = arith.constant 5 : index
    %159 = memref.load %arg1[%c5_69] : memref<64xf32, #tpu.memory_space<smem>>
    %160 = vector.broadcast %159 : f32 to vector<1x256xf32>
    %161 = arith.mulf %160, %158 : vector<1x256xf32>
    %162 = arith.addf %144, %161 : vector<1x256xf32>
    %c21 = arith.constant 21 : index
    %163 = memref.load %arg1[%c21] : memref<64xf32, #tpu.memory_space<smem>>
    %164 = vector.broadcast %163 : f32 to vector<1x256xf32>
    %165 = arith.mulf %164, %158 : vector<1x256xf32>
    %166 = arith.addf %148, %165 : vector<1x256xf32>
    %c37 = arith.constant 37 : index
    %167 = memref.load %arg1[%c37] : memref<64xf32, #tpu.memory_space<smem>>
    %168 = vector.broadcast %167 : f32 to vector<1x256xf32>
    %169 = arith.mulf %168, %158 : vector<1x256xf32>
    %170 = arith.addf %152, %169 : vector<1x256xf32>
    %c53 = arith.constant 53 : index
    %171 = memref.load %arg1[%c53] : memref<64xf32, #tpu.memory_space<smem>>
    %172 = vector.broadcast %171 : f32 to vector<1x256xf32>
    %173 = arith.mulf %172, %158 : vector<1x256xf32>
    %174 = arith.addf %156, %173 : vector<1x256xf32>
    %c1_70 = arith.constant 1 : index
    %c2_71 = arith.constant 2 : index
    %175 = vector.load %arg7[%c1_70, %c2_71] : memref<4x273xf32, #tpu.memory_space<vmem>>, vector<1x256xf32>
    %176 = arith.mulf %175, %5 : vector<1x256xf32>
    %c6_72 = arith.constant 6 : index
    %177 = memref.load %arg1[%c6_72] : memref<64xf32, #tpu.memory_space<smem>>
    %178 = vector.broadcast %177 : f32 to vector<1x256xf32>
    %179 = arith.mulf %178, %176 : vector<1x256xf32>
    %180 = arith.addf %162, %179 : vector<1x256xf32>
    %c22 = arith.constant 22 : index
    %181 = memref.load %arg1[%c22] : memref<64xf32, #tpu.memory_space<smem>>
    %182 = vector.broadcast %181 : f32 to vector<1x256xf32>
    %183 = arith.mulf %182, %176 : vector<1x256xf32>
    %184 = arith.addf %166, %183 : vector<1x256xf32>
    %c38 = arith.constant 38 : index
    %185 = memref.load %arg1[%c38] : memref<64xf32, #tpu.memory_space<smem>>
    %186 = vector.broadcast %185 : f32 to vector<1x256xf32>
    %187 = arith.mulf %186, %176 : vector<1x256xf32>
    %188 = arith.addf %170, %187 : vector<1x256xf32>
    %c54 = arith.constant 54 : index
    %189 = memref.load %arg1[%c54] : memref<64xf32, #tpu.memory_space<smem>>
    %190 = vector.broadcast %189 : f32 to vector<1x256xf32>
    %191 = arith.mulf %190, %176 : vector<1x256xf32>
    %192 = arith.addf %174, %191 : vector<1x256xf32>
    %c1_73 = arith.constant 1 : index
    %c16_74 = arith.constant 16 : index
    %193 = vector.load %arg7[%c1_73, %c16_74] : memref<4x273xf32, #tpu.memory_space<vmem>>, vector<1x256xf32>
    %194 = arith.mulf %193, %7 : vector<1x256xf32>
    %c7_75 = arith.constant 7 : index
    %195 = memref.load %arg1[%c7_75] : memref<64xf32, #tpu.memory_space<smem>>
    %196 = vector.broadcast %195 : f32 to vector<1x256xf32>
    %197 = arith.mulf %196, %194 : vector<1x256xf32>
    %198 = arith.addf %180, %197 : vector<1x256xf32>
    %c23 = arith.constant 23 : index
    %199 = memref.load %arg1[%c23] : memref<64xf32, #tpu.memory_space<smem>>
    %200 = vector.broadcast %199 : f32 to vector<1x256xf32>
    %201 = arith.mulf %200, %194 : vector<1x256xf32>
    %202 = arith.addf %184, %201 : vector<1x256xf32>
    %c39 = arith.constant 39 : index
    %203 = memref.load %arg1[%c39] : memref<64xf32, #tpu.memory_space<smem>>
    %204 = vector.broadcast %203 : f32 to vector<1x256xf32>
    %205 = arith.mulf %204, %194 : vector<1x256xf32>
    %206 = arith.addf %188, %205 : vector<1x256xf32>
    %c55 = arith.constant 55 : index
    %207 = memref.load %arg1[%c55] : memref<64xf32, #tpu.memory_space<smem>>
    %208 = vector.broadcast %207 : f32 to vector<1x256xf32>
    %209 = arith.mulf %208, %194 : vector<1x256xf32>
    %210 = arith.addf %192, %209 : vector<1x256xf32>
    %c2_76 = arith.constant 2 : index
    %c0_77 = arith.constant 0 : index
    %211 = vector.load %arg7[%c2_76, %c0_77] : memref<4x273xf32, #tpu.memory_space<vmem>>, vector<1x256xf32>
    %212 = arith.mulf %211, %1 : vector<1x256xf32>
    %c8 = arith.constant 8 : index
    %213 = memref.load %arg1[%c8] : memref<64xf32, #tpu.memory_space<smem>>
    %214 = vector.broadcast %213 : f32 to vector<1x256xf32>
    %215 = arith.mulf %214, %212 : vector<1x256xf32>
    %216 = arith.addf %198, %215 : vector<1x256xf32>
    %c24 = arith.constant 24 : index
    %217 = memref.load %arg1[%c24] : memref<64xf32, #tpu.memory_space<smem>>
    %218 = vector.broadcast %217 : f32 to vector<1x256xf32>
    %219 = arith.mulf %218, %212 : vector<1x256xf32>
    %220 = arith.addf %202, %219 : vector<1x256xf32>
    %c40 = arith.constant 40 : index
    %221 = memref.load %arg1[%c40] : memref<64xf32, #tpu.memory_space<smem>>
    %222 = vector.broadcast %221 : f32 to vector<1x256xf32>
    %223 = arith.mulf %222, %212 : vector<1x256xf32>
    %224 = arith.addf %206, %223 : vector<1x256xf32>
    %c56 = arith.constant 56 : index
    %225 = memref.load %arg1[%c56] : memref<64xf32, #tpu.memory_space<smem>>
    %226 = vector.broadcast %225 : f32 to vector<1x256xf32>
    %227 = arith.mulf %226, %212 : vector<1x256xf32>
    %228 = arith.addf %210, %227 : vector<1x256xf32>
    %c2_78 = arith.constant 2 : index
    %c1_79 = arith.constant 1 : index
    %229 = vector.load %arg7[%c2_78, %c1_79] : memref<4x273xf32, #tpu.memory_space<vmem>>, vector<1x256xf32>
    %230 = arith.mulf %229, %3 : vector<1x256xf32>
    %c9 = arith.constant 9 : index
    %231 = memref.load %arg1[%c9] : memref<64xf32, #tpu.memory_space<smem>>
    %232 = vector.broadcast %231 : f32 to vector<1x256xf32>
    %233 = arith.mulf %232, %230 : vector<1x256xf32>
    %234 = arith.addf %216, %233 : vector<1x256xf32>
    %c25 = arith.constant 25 : index
    %235 = memref.load %arg1[%c25] : memref<64xf32, #tpu.memory_space<smem>>
    %236 = vector.broadcast %235 : f32 to vector<1x256xf32>
    %237 = arith.mulf %236, %230 : vector<1x256xf32>
    %238 = arith.addf %220, %237 : vector<1x256xf32>
    %c41 = arith.constant 41 : index
    %239 = memref.load %arg1[%c41] : memref<64xf32, #tpu.memory_space<smem>>
    %240 = vector.broadcast %239 : f32 to vector<1x256xf32>
    %241 = arith.mulf %240, %230 : vector<1x256xf32>
    %242 = arith.addf %224, %241 : vector<1x256xf32>
    %c57 = arith.constant 57 : index
    %243 = memref.load %arg1[%c57] : memref<64xf32, #tpu.memory_space<smem>>
    %244 = vector.broadcast %243 : f32 to vector<1x256xf32>
    %245 = arith.mulf %244, %230 : vector<1x256xf32>
    %246 = arith.addf %228, %245 : vector<1x256xf32>
    %c2_80 = arith.constant 2 : index
    %c2_81 = arith.constant 2 : index
    %247 = vector.load %arg7[%c2_80, %c2_81] : memref<4x273xf32, #tpu.memory_space<vmem>>, vector<1x256xf32>
    %248 = arith.mulf %247, %5 : vector<1x256xf32>
    %c10 = arith.constant 10 : index
    %249 = memref.load %arg1[%c10] : memref<64xf32, #tpu.memory_space<smem>>
    %250 = vector.broadcast %249 : f32 to vector<1x256xf32>
    %251 = arith.mulf %250, %248 : vector<1x256xf32>
    %252 = arith.addf %234, %251 : vector<1x256xf32>
    %c26 = arith.constant 26 : index
    %253 = memref.load %arg1[%c26] : memref<64xf32, #tpu.memory_space<smem>>
    %254 = vector.broadcast %253 : f32 to vector<1x256xf32>
    %255 = arith.mulf %254, %248 : vector<1x256xf32>
    %256 = arith.addf %238, %255 : vector<1x256xf32>
    %c42 = arith.constant 42 : index
    %257 = memref.load %arg1[%c42] : memref<64xf32, #tpu.memory_space<smem>>
    %258 = vector.broadcast %257 : f32 to vector<1x256xf32>
    %259 = arith.mulf %258, %248 : vector<1x256xf32>
    %260 = arith.addf %242, %259 : vector<1x256xf32>
    %c58 = arith.constant 58 : index
    %261 = memref.load %arg1[%c58] : memref<64xf32, #tpu.memory_space<smem>>
    %262 = vector.broadcast %261 : f32 to vector<1x256xf32>
    %263 = arith.mulf %262, %248 : vector<1x256xf32>
    %264 = arith.addf %246, %263 : vector<1x256xf32>
    %c2_82 = arith.constant 2 : index
    %c16_83 = arith.constant 16 : index
    %265 = vector.load %arg7[%c2_82, %c16_83] : memref<4x273xf32, #tpu.memory_space<vmem>>, vector<1x256xf32>
    %266 = arith.mulf %265, %7 : vector<1x256xf32>
    %c11 = arith.constant 11 : index
    %267 = memref.load %arg1[%c11] : memref<64xf32, #tpu.memory_space<smem>>
    %268 = vector.broadcast %267 : f32 to vector<1x256xf32>
    %269 = arith.mulf %268, %266 : vector<1x256xf32>
    %270 = arith.addf %252, %269 : vector<1x256xf32>
    %c27 = arith.constant 27 : index
    %271 = memref.load %arg1[%c27] : memref<64xf32, #tpu.memory_space<smem>>
    %272 = vector.broadcast %271 : f32 to vector<1x256xf32>
    %273 = arith.mulf %272, %266 : vector<1x256xf32>
    %274 = arith.addf %256, %273 : vector<1x256xf32>
    %c43 = arith.constant 43 : index
    %275 = memref.load %arg1[%c43] : memref<64xf32, #tpu.memory_space<smem>>
    %276 = vector.broadcast %275 : f32 to vector<1x256xf32>
    %277 = arith.mulf %276, %266 : vector<1x256xf32>
    %278 = arith.addf %260, %277 : vector<1x256xf32>
    %c59 = arith.constant 59 : index
    %279 = memref.load %arg1[%c59] : memref<64xf32, #tpu.memory_space<smem>>
    %280 = vector.broadcast %279 : f32 to vector<1x256xf32>
    %281 = arith.mulf %280, %266 : vector<1x256xf32>
    %282 = arith.addf %264, %281 : vector<1x256xf32>
    %c3_84 = arith.constant 3 : index
    %c0_85 = arith.constant 0 : index
    %283 = vector.load %arg7[%c3_84, %c0_85] : memref<4x273xf32, #tpu.memory_space<vmem>>, vector<1x256xf32>
    %284 = arith.mulf %283, %1 : vector<1x256xf32>
    %c12 = arith.constant 12 : index
    %285 = memref.load %arg1[%c12] : memref<64xf32, #tpu.memory_space<smem>>
    %286 = vector.broadcast %285 : f32 to vector<1x256xf32>
    %287 = arith.mulf %286, %284 : vector<1x256xf32>
    %288 = arith.addf %270, %287 : vector<1x256xf32>
    %c28 = arith.constant 28 : index
    %289 = memref.load %arg1[%c28] : memref<64xf32, #tpu.memory_space<smem>>
    %290 = vector.broadcast %289 : f32 to vector<1x256xf32>
    %291 = arith.mulf %290, %284 : vector<1x256xf32>
    %292 = arith.addf %274, %291 : vector<1x256xf32>
    %c44 = arith.constant 44 : index
    %293 = memref.load %arg1[%c44] : memref<64xf32, #tpu.memory_space<smem>>
    %294 = vector.broadcast %293 : f32 to vector<1x256xf32>
    %295 = arith.mulf %294, %284 : vector<1x256xf32>
    %296 = arith.addf %278, %295 : vector<1x256xf32>
    %c60 = arith.constant 60 : index
    %297 = memref.load %arg1[%c60] : memref<64xf32, #tpu.memory_space<smem>>
    %298 = vector.broadcast %297 : f32 to vector<1x256xf32>
    %299 = arith.mulf %298, %284 : vector<1x256xf32>
    %300 = arith.addf %282, %299 : vector<1x256xf32>
    %c3_86 = arith.constant 3 : index
    %c1_87 = arith.constant 1 : index
    %301 = vector.load %arg7[%c3_86, %c1_87] : memref<4x273xf32, #tpu.memory_space<vmem>>, vector<1x256xf32>
    %302 = arith.mulf %301, %3 : vector<1x256xf32>
    %c13 = arith.constant 13 : index
    %303 = memref.load %arg1[%c13] : memref<64xf32, #tpu.memory_space<smem>>
    %304 = vector.broadcast %303 : f32 to vector<1x256xf32>
    %305 = arith.mulf %304, %302 : vector<1x256xf32>
    %306 = arith.addf %288, %305 : vector<1x256xf32>
    %c29 = arith.constant 29 : index
    %307 = memref.load %arg1[%c29] : memref<64xf32, #tpu.memory_space<smem>>
    %308 = vector.broadcast %307 : f32 to vector<1x256xf32>
    %309 = arith.mulf %308, %302 : vector<1x256xf32>
    %310 = arith.addf %292, %309 : vector<1x256xf32>
    %c45 = arith.constant 45 : index
    %311 = memref.load %arg1[%c45] : memref<64xf32, #tpu.memory_space<smem>>
    %312 = vector.broadcast %311 : f32 to vector<1x256xf32>
    %313 = arith.mulf %312, %302 : vector<1x256xf32>
    %314 = arith.addf %296, %313 : vector<1x256xf32>
    %c61 = arith.constant 61 : index
    %315 = memref.load %arg1[%c61] : memref<64xf32, #tpu.memory_space<smem>>
    %316 = vector.broadcast %315 : f32 to vector<1x256xf32>
    %317 = arith.mulf %316, %302 : vector<1x256xf32>
    %318 = arith.addf %300, %317 : vector<1x256xf32>
    %c3_88 = arith.constant 3 : index
    %c2_89 = arith.constant 2 : index
    %319 = vector.load %arg7[%c3_88, %c2_89] : memref<4x273xf32, #tpu.memory_space<vmem>>, vector<1x256xf32>
    %320 = arith.mulf %319, %5 : vector<1x256xf32>
    %c14 = arith.constant 14 : index
    %321 = memref.load %arg1[%c14] : memref<64xf32, #tpu.memory_space<smem>>
    %322 = vector.broadcast %321 : f32 to vector<1x256xf32>
    %323 = arith.mulf %322, %320 : vector<1x256xf32>
    %324 = arith.addf %306, %323 : vector<1x256xf32>
    %c30 = arith.constant 30 : index
    %325 = memref.load %arg1[%c30] : memref<64xf32, #tpu.memory_space<smem>>
    %326 = vector.broadcast %325 : f32 to vector<1x256xf32>
    %327 = arith.mulf %326, %320 : vector<1x256xf32>
    %328 = arith.addf %310, %327 : vector<1x256xf32>
    %c46 = arith.constant 46 : index
    %329 = memref.load %arg1[%c46] : memref<64xf32, #tpu.memory_space<smem>>
    %330 = vector.broadcast %329 : f32 to vector<1x256xf32>
    %331 = arith.mulf %330, %320 : vector<1x256xf32>
    %332 = arith.addf %314, %331 : vector<1x256xf32>
    %c62 = arith.constant 62 : index
    %333 = memref.load %arg1[%c62] : memref<64xf32, #tpu.memory_space<smem>>
    %334 = vector.broadcast %333 : f32 to vector<1x256xf32>
    %335 = arith.mulf %334, %320 : vector<1x256xf32>
    %336 = arith.addf %318, %335 : vector<1x256xf32>
    %c3_90 = arith.constant 3 : index
    %c16_91 = arith.constant 16 : index
    %337 = vector.load %arg7[%c3_90, %c16_91] : memref<4x273xf32, #tpu.memory_space<vmem>>, vector<1x256xf32>
    %338 = arith.mulf %337, %7 : vector<1x256xf32>
    %c15 = arith.constant 15 : index
    %339 = memref.load %arg1[%c15] : memref<64xf32, #tpu.memory_space<smem>>
    %340 = vector.broadcast %339 : f32 to vector<1x256xf32>
    %341 = arith.mulf %340, %338 : vector<1x256xf32>
    %342 = arith.addf %324, %341 : vector<1x256xf32>
    %c31 = arith.constant 31 : index
    %343 = memref.load %arg1[%c31] : memref<64xf32, #tpu.memory_space<smem>>
    %344 = vector.broadcast %343 : f32 to vector<1x256xf32>
    %345 = arith.mulf %344, %338 : vector<1x256xf32>
    %346 = arith.addf %328, %345 : vector<1x256xf32>
    %c47 = arith.constant 47 : index
    %347 = memref.load %arg1[%c47] : memref<64xf32, #tpu.memory_space<smem>>
    %348 = vector.broadcast %347 : f32 to vector<1x256xf32>
    %349 = arith.mulf %348, %338 : vector<1x256xf32>
    %350 = arith.addf %332, %349 : vector<1x256xf32>
    %c63 = arith.constant 63 : index
    %351 = memref.load %arg1[%c63] : memref<64xf32, #tpu.memory_space<smem>>
    %352 = vector.broadcast %351 : f32 to vector<1x256xf32>
    %353 = arith.mulf %352, %338 : vector<1x256xf32>
    %354 = arith.addf %336, %353 : vector<1x256xf32>
    %cst = arith.constant 0.000000e+00 : f32
    %355 = vector.broadcast %cst : f32 to vector<1x256xf32>
    %356 = arith.maximumf %342, %355 : vector<1x256xf32>
    %c0_92 = arith.constant 0 : index
    %c0_93 = arith.constant 0 : index
    %c0_94 = arith.constant 0 : index
    %357 = vector.load %arg6[%c0_92, %c0_93, %c0_94] : memref<2x4x256xf32, #tpu.memory_space<vmem>>, vector<1x1x256xf32>
    %358 = vector.shape_cast %357 : vector<1x1x256xf32> to vector<1x256xf32>
    %359 = vector.shape_cast %356 : vector<1x256xf32> to vector<1x1x256xf32>
    tpu.vector_store %arg6[%c0_92, %c0_93, %c0_94], %359 {strides = array<i32>} : memref<2x4x256xf32, #tpu.memory_space<vmem>>, vector<1x1x256xf32>,
    %cst_95 = arith.constant 0.000000e+00 : f32
    %360 = vector.broadcast %cst_95 : f32 to vector<1x256xf32>
    %361 = arith.maximumf %346, %360 : vector<1x256xf32>
    %c0_96 = arith.constant 0 : index
    %c1_97 = arith.constant 1 : index
    %c0_98 = arith.constant 0 : index
    %362 = vector.load %arg6[%c0_96, %c1_97, %c0_98] : memref<2x4x256xf32, #tpu.memory_space<vmem>>, vector<1x1x256xf32>
    %363 = vector.shape_cast %362 : vector<1x1x256xf32> to vector<1x256xf32>
    %364 = vector.shape_cast %361 : vector<1x256xf32> to vector<1x1x256xf32>
    tpu.vector_store %arg6[%c0_96, %c1_97, %c0_98], %364 {strides = array<i32>} : memref<2x4x256xf32, #tpu.memory_space<vmem>>, vector<1x1x256xf32>,
    %cst_99 = arith.constant 0.000000e+00 : f32
    %365 = vector.broadcast %cst_99 : f32 to vector<1x256xf32>
    %366 = arith.maximumf %350, %365 : vector<1x256xf32>
    %c0_100 = arith.constant 0 : index
    %c2_101 = arith.constant 2 : index
    %c0_102 = arith.constant 0 : index
    %367 = vector.load %arg6[%c0_100, %c2_101, %c0_102] : memref<2x4x256xf32, #tpu.memory_space<vmem>>, vector<1x1x256xf32>
    %368 = vector.shape_cast %367 : vector<1x1x256xf32> to vector<1x256xf32>
    %369 = vector.shape_cast %366 : vector<1x256xf32> to vector<1x1x256xf32>
    tpu.vector_store %arg6[%c0_100, %c2_101, %c0_102], %369 {strides = array<i32>} : memref<2x4x256xf32, #tpu.memory_space<vmem>>, vector<1x1x256xf32>,
    %cst_103 = arith.constant 0.000000e+00 : f32
    %370 = vector.broadcast %cst_103 : f32 to vector<1x256xf32>
    %371 = arith.maximumf %354, %370 : vector<1x256xf32>
    %c0_104 = arith.constant 0 : index
    %c3_105 = arith.constant 3 : index
    %c0_106 = arith.constant 0 : index
    %372 = vector.load %arg6[%c0_104, %c3_105, %c0_106] : memref<2x4x256xf32, #tpu.memory_space<vmem>>, vector<1x1x256xf32>
    %373 = vector.shape_cast %372 : vector<1x1x256xf32> to vector<1x256xf32>
    %374 = vector.shape_cast %371 : vector<1x256xf32> to vector<1x1x256xf32>
    tpu.vector_store %arg6[%c0_104, %c3_105, %c0_106], %374 {strides = array<i32>} : memref<2x4x256xf32, #tpu.memory_space<vmem>>, vector<1x1x256xf32>,
    %c0_107 = arith.constant 0 : index
    %c0_108 = arith.constant 0 : index
    %375 = vector.load %arg4[%c0_107, %c0_108] : memref<4x273xf32, #tpu.memory_space<vmem>>, vector<4x273xf32>
    %c1_109 = arith.constant 1 : index
    %c0_110 = arith.constant 0 : index
    %376 = memref.load %arg0[%c1_109, %c0_110] : memref<2x8xf32, #tpu.memory_space<smem>>
    %c0_111 = arith.constant 0 : index
    %c0_112 = arith.constant 0 : index
    %c0_113 = arith.constant 0 : index
    %377 = vector.load %arg3[%c0_111, %c0_112, %c0_113] : memref<8x4x273xf32, #tpu.memory_space<vmem>>, vector<1x4x273xf32>
    %378 = vector.shape_cast %377 : vector<1x4x273xf32> to vector<4x273xf32>
    %379 = vector.broadcast %376 : f32 to vector<4x273xf32>
    %380 = arith.mulf %379, %378 : vector<4x273xf32>
    %381 = arith.addf %375, %380 : vector<4x273xf32>
    %c1_114 = arith.constant 1 : index
    %c1_115 = arith.constant 1 : index
    %382 = memref.load %arg0[%c1_114, %c1_115] : memref<2x8xf32, #tpu.memory_space<smem>>
    %c1_116 = arith.constant 1 : index
    %c0_117 = arith.constant 0 : index
    %c0_118 = arith.constant 0 : index
    %383 = vector.load %arg3[%c1_116, %c0_117, %c0_118] : memref<8x4x273xf32, #tpu.memory_space<vmem>>, vector<1x4x273xf32>
    %384 = vector.shape_cast %383 : vector<1x4x273xf32> to vector<4x273xf32>
    %385 = vector.broadcast %382 : f32 to vector<4x273xf32>
    %386 = arith.mulf %385, %384 : vector<4x273xf32>
    %387 = arith.addf %381, %386 : vector<4x273xf32>
    %c1_119 = arith.constant 1 : index
    %c2_120 = arith.constant 2 : index
    %388 = memref.load %arg0[%c1_119, %c2_120] : memref<2x8xf32, #tpu.memory_space<smem>>
    %c2_121 = arith.constant 2 : index
    %c0_122 = arith.constant 0 : index
    %c0_123 = arith.constant 0 : index
    %389 = vector.load %arg3[%c2_121, %c0_122, %c0_123] : memref<8x4x273xf32, #tpu.memory_space<vmem>>, vector<1x4x273xf32>
    %390 = vector.shape_cast %389 : vector<1x4x273xf32> to vector<4x273xf32>
    %391 = vector.broadcast %388 : f32 to vector<4x273xf32>
    %392 = arith.mulf %391, %390 : vector<4x273xf32>
    %393 = arith.addf %387, %392 : vector<4x273xf32>
    %c1_124 = arith.constant 1 : index
    %c3_125 = arith.constant 3 : index
    %394 = memref.load %arg0[%c1_124, %c3_125] : memref<2x8xf32, #tpu.memory_space<smem>>
    %c3_126 = arith.constant 3 : index
    %c0_127 = arith.constant 0 : index
    %c0_128 = arith.constant 0 : index
    %395 = vector.load %arg3[%c3_126, %c0_127, %c0_128] : memref<8x4x273xf32, #tpu.memory_space<vmem>>, vector<1x4x273xf32>
    %396 = vector.shape_cast %395 : vector<1x4x273xf32> to vector<4x273xf32>
    %397 = vector.broadcast %394 : f32 to vector<4x273xf32>
    %398 = arith.mulf %397, %396 : vector<4x273xf32>
    %399 = arith.addf %393, %398 : vector<4x273xf32>
    %c1_129 = arith.constant 1 : index
    %c4_130 = arith.constant 4 : index
    %400 = memref.load %arg0[%c1_129, %c4_130] : memref<2x8xf32, #tpu.memory_space<smem>>
    %c4_131 = arith.constant 4 : index
    %c0_132 = arith.constant 0 : index
    %c0_133 = arith.constant 0 : index
    %401 = vector.load %arg3[%c4_131, %c0_132, %c0_133] : memref<8x4x273xf32, #tpu.memory_space<vmem>>, vector<1x4x273xf32>
    %402 = vector.shape_cast %401 : vector<1x4x273xf32> to vector<4x273xf32>
    %403 = vector.broadcast %400 : f32 to vector<4x273xf32>
    %404 = arith.mulf %403, %402 : vector<4x273xf32>
    %405 = arith.addf %399, %404 : vector<4x273xf32>
    %c1_134 = arith.constant 1 : index
    %c5_135 = arith.constant 5 : index
    %406 = memref.load %arg0[%c1_134, %c5_135] : memref<2x8xf32, #tpu.memory_space<smem>>
    %c5_136 = arith.constant 5 : index
    %c0_137 = arith.constant 0 : index
    %c0_138 = arith.constant 0 : index
    %407 = vector.load %arg3[%c5_136, %c0_137, %c0_138] : memref<8x4x273xf32, #tpu.memory_space<vmem>>, vector<1x4x273xf32>
    %408 = vector.shape_cast %407 : vector<1x4x273xf32> to vector<4x273xf32>
    %409 = vector.broadcast %406 : f32 to vector<4x273xf32>
    %410 = arith.mulf %409, %408 : vector<4x273xf32>
    %411 = arith.addf %405, %410 : vector<4x273xf32>
    %c1_139 = arith.constant 1 : index
    %c6_140 = arith.constant 6 : index
    %412 = memref.load %arg0[%c1_139, %c6_140] : memref<2x8xf32, #tpu.memory_space<smem>>
    %c6_141 = arith.constant 6 : index
    %c0_142 = arith.constant 0 : index
    %c0_143 = arith.constant 0 : index
    %413 = vector.load %arg3[%c6_141, %c0_142, %c0_143] : memref<8x4x273xf32, #tpu.memory_space<vmem>>, vector<1x4x273xf32>
    %414 = vector.shape_cast %413 : vector<1x4x273xf32> to vector<4x273xf32>
    %415 = vector.broadcast %412 : f32 to vector<4x273xf32>
    %416 = arith.mulf %415, %414 : vector<4x273xf32>
    %417 = arith.addf %411, %416 : vector<4x273xf32>
    %c1_144 = arith.constant 1 : index
    %c7_145 = arith.constant 7 : index
    %418 = memref.load %arg0[%c1_144, %c7_145] : memref<2x8xf32, #tpu.memory_space<smem>>
    %c7_146 = arith.constant 7 : index
    %c0_147 = arith.constant 0 : index
    %c0_148 = arith.constant 0 : index
    %419 = vector.load %arg3[%c7_146, %c0_147, %c0_148] : memref<8x4x273xf32, #tpu.memory_space<vmem>>, vector<1x4x273xf32>
    %420 = vector.shape_cast %419 : vector<1x4x273xf32> to vector<4x273xf32>
    %421 = vector.broadcast %418 : f32 to vector<4x273xf32>
    %422 = arith.mulf %421, %420 : vector<4x273xf32>
    %423 = arith.addf %417, %422 : vector<4x273xf32>
    %424 = math.tanh %423 : vector<4x273xf32>
    %c0_149 = arith.constant 0 : index
    %c0_150 = arith.constant 0 : index
    %425 = vector.load %arg7[%c0_149, %c0_150] : memref<4x273xf32, #tpu.memory_space<vmem>>, vector<4x273xf32>
    tpu.vector_store %arg7[%c0_149, %c0_150], %424 {strides = array<i32>} : memref<4x273xf32, #tpu.memory_space<vmem>>, vector<4x273xf32>,
    %c0_151 = arith.constant 0 : index
    %426 = memref.load %arg2[%c0_151] : memref<4xf32, #tpu.memory_space<smem>>
    %427 = vector.broadcast %426 : f32 to vector<1x256xf32>
    %c1_152 = arith.constant 1 : index
    %428 = memref.load %arg2[%c1_152] : memref<4xf32, #tpu.memory_space<smem>>
    %429 = vector.broadcast %428 : f32 to vector<1x256xf32>
    %c2_153 = arith.constant 2 : index
    %430 = memref.load %arg2[%c2_153] : memref<4xf32, #tpu.memory_space<smem>>
    %431 = vector.broadcast %430 : f32 to vector<1x256xf32>
    %c3_154 = arith.constant 3 : index
    %432 = memref.load %arg2[%c3_154] : memref<4xf32, #tpu.memory_space<smem>>
    %433 = vector.broadcast %432 : f32 to vector<1x256xf32>
    %c0_155 = arith.constant 0 : index
    %c0_156 = arith.constant 0 : index
    %434 = vector.load %arg7[%c0_155, %c0_156] : memref<4x273xf32, #tpu.memory_space<vmem>>, vector<1x256xf32>
    %435 = arith.mulf %434, %1 : vector<1x256xf32>
    %c0_157 = arith.constant 0 : index
    %436 = memref.load %arg1[%c0_157] : memref<64xf32, #tpu.memory_space<smem>>
    %437 = vector.broadcast %436 : f32 to vector<1x256xf32>
    %438 = arith.mulf %437, %435 : vector<1x256xf32>
    %439 = arith.addf %427, %438 : vector<1x256xf32>
    %c16_158 = arith.constant 16 : index
    %440 = memref.load %arg1[%c16_158] : memref<64xf32, #tpu.memory_space<smem>>
    %441 = vector.broadcast %440 : f32 to vector<1x256xf32>
    %442 = arith.mulf %441, %435 : vector<1x256xf32>
    %443 = arith.addf %429, %442 : vector<1x256xf32>
    %c32_159 = arith.constant 32 : index
    %444 = memref.load %arg1[%c32_159] : memref<64xf32, #tpu.memory_space<smem>>
    %445 = vector.broadcast %444 : f32 to vector<1x256xf32>
    %446 = arith.mulf %445, %435 : vector<1x256xf32>
    %447 = arith.addf %431, %446 : vector<1x256xf32>
    %c48_160 = arith.constant 48 : index
    %448 = memref.load %arg1[%c48_160] : memref<64xf32, #tpu.memory_space<smem>>
    %449 = vector.broadcast %448 : f32 to vector<1x256xf32>
    %450 = arith.mulf %449, %435 : vector<1x256xf32>
    %451 = arith.addf %433, %450 : vector<1x256xf32>
    %c0_161 = arith.constant 0 : index
    %c1_162 = arith.constant 1 : index
    %452 = vector.load %arg7[%c0_161, %c1_162] : memref<4x273xf32, #tpu.memory_space<vmem>>, vector<1x256xf32>
    %453 = arith.mulf %452, %3 : vector<1x256xf32>
    %c1_163 = arith.constant 1 : index
    %454 = memref.load %arg1[%c1_163] : memref<64xf32, #tpu.memory_space<smem>>
    %455 = vector.broadcast %454 : f32 to vector<1x256xf32>
    %456 = arith.mulf %455, %453 : vector<1x256xf32>
    %457 = arith.addf %439, %456 : vector<1x256xf32>
    %c17_164 = arith.constant 17 : index
    %458 = memref.load %arg1[%c17_164] : memref<64xf32, #tpu.memory_space<smem>>
    %459 = vector.broadcast %458 : f32 to vector<1x256xf32>
    %460 = arith.mulf %459, %453 : vector<1x256xf32>
    %461 = arith.addf %443, %460 : vector<1x256xf32>
    %c33_165 = arith.constant 33 : index
    %462 = memref.load %arg1[%c33_165] : memref<64xf32, #tpu.memory_space<smem>>
    %463 = vector.broadcast %462 : f32 to vector<1x256xf32>
    %464 = arith.mulf %463, %453 : vector<1x256xf32>
    %465 = arith.addf %447, %464 : vector<1x256xf32>
    %c49_166 = arith.constant 49 : index
    %466 = memref.load %arg1[%c49_166] : memref<64xf32, #tpu.memory_space<smem>>
    %467 = vector.broadcast %466 : f32 to vector<1x256xf32>
    %468 = arith.mulf %467, %453 : vector<1x256xf32>
    %469 = arith.addf %451, %468 : vector<1x256xf32>
    %c0_167 = arith.constant 0 : index
    %c2_168 = arith.constant 2 : index
    %470 = vector.load %arg7[%c0_167, %c2_168] : memref<4x273xf32, #tpu.memory_space<vmem>>, vector<1x256xf32>
    %471 = arith.mulf %470, %5 : vector<1x256xf32>
    %c2_169 = arith.constant 2 : index
    %472 = memref.load %arg1[%c2_169] : memref<64xf32, #tpu.memory_space<smem>>
    %473 = vector.broadcast %472 : f32 to vector<1x256xf32>
    %474 = arith.mulf %473, %471 : vector<1x256xf32>
    %475 = arith.addf %457, %474 : vector<1x256xf32>
    %c18_170 = arith.constant 18 : index
    %476 = memref.load %arg1[%c18_170] : memref<64xf32, #tpu.memory_space<smem>>
    %477 = vector.broadcast %476 : f32 to vector<1x256xf32>
    %478 = arith.mulf %477, %471 : vector<1x256xf32>
    %479 = arith.addf %461, %478 : vector<1x256xf32>
    %c34_171 = arith.constant 34 : index
    %480 = memref.load %arg1[%c34_171] : memref<64xf32, #tpu.memory_space<smem>>
    %481 = vector.broadcast %480 : f32 to vector<1x256xf32>
    %482 = arith.mulf %481, %471 : vector<1x256xf32>
    %483 = arith.addf %465, %482 : vector<1x256xf32>
    %c50_172 = arith.constant 50 : index
    %484 = memref.load %arg1[%c50_172] : memref<64xf32, #tpu.memory_space<smem>>
    %485 = vector.broadcast %484 : f32 to vector<1x256xf32>
    %486 = arith.mulf %485, %471 : vector<1x256xf32>
    %487 = arith.addf %469, %486 : vector<1x256xf32>
    %c0_173 = arith.constant 0 : index
    %c16_174 = arith.constant 16 : index
    %488 = vector.load %arg7[%c0_173, %c16_174] : memref<4x273xf32, #tpu.memory_space<vmem>>, vector<1x256xf32>
    %489 = arith.mulf %488, %7 : vector<1x256xf32>
    %c3_175 = arith.constant 3 : index
    %490 = memref.load %arg1[%c3_175] : memref<64xf32, #tpu.memory_space<smem>>
    %491 = vector.broadcast %490 : f32 to vector<1x256xf32>
    %492 = arith.mulf %491, %489 : vector<1x256xf32>
    %493 = arith.addf %475, %492 : vector<1x256xf32>
    %c19_176 = arith.constant 19 : index
    %494 = memref.load %arg1[%c19_176] : memref<64xf32, #tpu.memory_space<smem>>
    %495 = vector.broadcast %494 : f32 to vector<1x256xf32>
    %496 = arith.mulf %495, %489 : vector<1x256xf32>
    %497 = arith.addf %479, %496 : vector<1x256xf32>
    %c35_177 = arith.constant 35 : index
    %498 = memref.load %arg1[%c35_177] : memref<64xf32, #tpu.memory_space<smem>>
    %499 = vector.broadcast %498 : f32 to vector<1x256xf32>
    %500 = arith.mulf %499, %489 : vector<1x256xf32>
    %501 = arith.addf %483, %500 : vector<1x256xf32>
    %c51_178 = arith.constant 51 : index
    %502 = memref.load %arg1[%c51_178] : memref<64xf32, #tpu.memory_space<smem>>
    %503 = vector.broadcast %502 : f32 to vector<1x256xf32>
    %504 = arith.mulf %503, %489 : vector<1x256xf32>
    %505 = arith.addf %487, %504 : vector<1x256xf32>
    %c1_179 = arith.constant 1 : index
    %c0_180 = arith.constant 0 : index
    %506 = vector.load %arg7[%c1_179, %c0_180] : memref<4x273xf32, #tpu.memory_space<vmem>>, vector<1x256xf32>
    %507 = arith.mulf %506, %1 : vector<1x256xf32>
    %c4_181 = arith.constant 4 : index
    %508 = memref.load %arg1[%c4_181] : memref<64xf32, #tpu.memory_space<smem>>
    %509 = vector.broadcast %508 : f32 to vector<1x256xf32>
    %510 = arith.mulf %509, %507 : vector<1x256xf32>
    %511 = arith.addf %493, %510 : vector<1x256xf32>
    %c20_182 = arith.constant 20 : index
    %512 = memref.load %arg1[%c20_182] : memref<64xf32, #tpu.memory_space<smem>>
    %513 = vector.broadcast %512 : f32 to vector<1x256xf32>
    %514 = arith.mulf %513, %507 : vector<1x256xf32>
    %515 = arith.addf %497, %514 : vector<1x256xf32>
    %c36_183 = arith.constant 36 : index
    %516 = memref.load %arg1[%c36_183] : memref<64xf32, #tpu.memory_space<smem>>
    %517 = vector.broadcast %516 : f32 to vector<1x256xf32>
    %518 = arith.mulf %517, %507 : vector<1x256xf32>
    %519 = arith.addf %501, %518 : vector<1x256xf32>
    %c52_184 = arith.constant 52 : index
    %520 = memref.load %arg1[%c52_184] : memref<64xf32, #tpu.memory_space<smem>>
    %521 = vector.broadcast %520 : f32 to vector<1x256xf32>
    %522 = arith.mulf %521, %507 : vector<1x256xf32>
    %523 = arith.addf %505, %522 : vector<1x256xf32>
    %c1_185 = arith.constant 1 : index
    %c1_186 = arith.constant 1 : index
    %524 = vector.load %arg7[%c1_185, %c1_186] : memref<4x273xf32, #tpu.memory_space<vmem>>, vector<1x256xf32>
    %525 = arith.mulf %524, %3 : vector<1x256xf32>
    %c5_187 = arith.constant 5 : index
    %526 = memref.load %arg1[%c5_187] : memref<64xf32, #tpu.memory_space<smem>>
    %527 = vector.broadcast %526 : f32 to vector<1x256xf32>
    %528 = arith.mulf %527, %525 : vector<1x256xf32>
    %529 = arith.addf %511, %528 : vector<1x256xf32>
    %c21_188 = arith.constant 21 : index
    %530 = memref.load %arg1[%c21_188] : memref<64xf32, #tpu.memory_space<smem>>
    %531 = vector.broadcast %530 : f32 to vector<1x256xf32>
    %532 = arith.mulf %531, %525 : vector<1x256xf32>
    %533 = arith.addf %515, %532 : vector<1x256xf32>
    %c37_189 = arith.constant 37 : index
    %534 = memref.load %arg1[%c37_189] : memref<64xf32, #tpu.memory_space<smem>>
    %535 = vector.broadcast %534 : f32 to vector<1x256xf32>
    %536 = arith.mulf %535, %525 : vector<1x256xf32>
    %537 = arith.addf %519, %536 : vector<1x256xf32>
    %c53_190 = arith.constant 53 : index
    %538 = memref.load %arg1[%c53_190] : memref<64xf32, #tpu.memory_space<smem>>
    %539 = vector.broadcast %538 : f32 to vector<1x256xf32>
    %540 = arith.mulf %539, %525 : vector<1x256xf32>
    %541 = arith.addf %523, %540 : vector<1x256xf32>
    %c1_191 = arith.constant 1 : index
    %c2_192 = arith.constant 2 : index
    %542 = vector.load %arg7[%c1_191, %c2_192] : memref<4x273xf32, #tpu.memory_space<vmem>>, vector<1x256xf32>
    %543 = arith.mulf %542, %5 : vector<1x256xf32>
    %c6_193 = arith.constant 6 : index
    %544 = memref.load %arg1[%c6_193] : memref<64xf32, #tpu.memory_space<smem>>
    %545 = vector.broadcast %544 : f32 to vector<1x256xf32>
    %546 = arith.mulf %545, %543 : vector<1x256xf32>
    %547 = arith.addf %529, %546 : vector<1x256xf32>
    %c22_194 = arith.constant 22 : index
    %548 = memref.load %arg1[%c22_194] : memref<64xf32, #tpu.memory_space<smem>>
    %549 = vector.broadcast %548 : f32 to vector<1x256xf32>
    %550 = arith.mulf %549, %543 : vector<1x256xf32>
    %551 = arith.addf %533, %550 : vector<1x256xf32>
    %c38_195 = arith.constant 38 : index
    %552 = memref.load %arg1[%c38_195] : memref<64xf32, #tpu.memory_space<smem>>
    %553 = vector.broadcast %552 : f32 to vector<1x256xf32>
    %554 = arith.mulf %553, %543 : vector<1x256xf32>
    %555 = arith.addf %537, %554 : vector<1x256xf32>
    %c54_196 = arith.constant 54 : index
    %556 = memref.load %arg1[%c54_196] : memref<64xf32, #tpu.memory_space<smem>>
    %557 = vector.broadcast %556 : f32 to vector<1x256xf32>
    %558 = arith.mulf %557, %543 : vector<1x256xf32>
    %559 = arith.addf %541, %558 : vector<1x256xf32>
    %c1_197 = arith.constant 1 : index
    %c16_198 = arith.constant 16 : index
    %560 = vector.load %arg7[%c1_197, %c16_198] : memref<4x273xf32, #tpu.memory_space<vmem>>, vector<1x256xf32>
    %561 = arith.mulf %560, %7 : vector<1x256xf32>
    %c7_199 = arith.constant 7 : index
    %562 = memref.load %arg1[%c7_199] : memref<64xf32, #tpu.memory_space<smem>>
    %563 = vector.broadcast %562 : f32 to vector<1x256xf32>
    %564 = arith.mulf %563, %561 : vector<1x256xf32>
    %565 = arith.addf %547, %564 : vector<1x256xf32>
    %c23_200 = arith.constant 23 : index
    %566 = memref.load %arg1[%c23_200] : memref<64xf32, #tpu.memory_space<smem>>
    %567 = vector.broadcast %566 : f32 to vector<1x256xf32>
    %568 = arith.mulf %567, %561 : vector<1x256xf32>
    %569 = arith.addf %551, %568 : vector<1x256xf32>
    %c39_201 = arith.constant 39 : index
    %570 = memref.load %arg1[%c39_201] : memref<64xf32, #tpu.memory_space<smem>>
    %571 = vector.broadcast %570 : f32 to vector<1x256xf32>
    %572 = arith.mulf %571, %561 : vector<1x256xf32>
    %573 = arith.addf %555, %572 : vector<1x256xf32>
    %c55_202 = arith.constant 55 : index
    %574 = memref.load %arg1[%c55_202] : memref<64xf32, #tpu.memory_space<smem>>
    %575 = vector.broadcast %574 : f32 to vector<1x256xf32>
    %576 = arith.mulf %575, %561 : vector<1x256xf32>
    %577 = arith.addf %559, %576 : vector<1x256xf32>
    %c2_203 = arith.constant 2 : index
    %c0_204 = arith.constant 0 : index
    %578 = vector.load %arg7[%c2_203, %c0_204] : memref<4x273xf32, #tpu.memory_space<vmem>>, vector<1x256xf32>
    %579 = arith.mulf %578, %1 : vector<1x256xf32>
    %c8_205 = arith.constant 8 : index
    %580 = memref.load %arg1[%c8_205] : memref<64xf32, #tpu.memory_space<smem>>
    %581 = vector.broadcast %580 : f32 to vector<1x256xf32>
    %582 = arith.mulf %581, %579 : vector<1x256xf32>
    %583 = arith.addf %565, %582 : vector<1x256xf32>
    %c24_206 = arith.constant 24 : index
    %584 = memref.load %arg1[%c24_206] : memref<64xf32, #tpu.memory_space<smem>>
    %585 = vector.broadcast %584 : f32 to vector<1x256xf32>
    %586 = arith.mulf %585, %579 : vector<1x256xf32>
    %587 = arith.addf %569, %586 : vector<1x256xf32>
    %c40_207 = arith.constant 40 : index
    %588 = memref.load %arg1[%c40_207] : memref<64xf32, #tpu.memory_space<smem>>
    %589 = vector.broadcast %588 : f32 to vector<1x256xf32>
    %590 = arith.mulf %589, %579 : vector<1x256xf32>
    %591 = arith.addf %573, %590 : vector<1x256xf32>
    %c56_208 = arith.constant 56 : index
    %592 = memref.load %arg1[%c56_208] : memref<64xf32, #tpu.memory_space<smem>>
    %593 = vector.broadcast %592 : f32 to vector<1x256xf32>
    %594 = arith.mulf %593, %579 : vector<1x256xf32>
    %595 = arith.addf %577, %594 : vector<1x256xf32>
    %c2_209 = arith.constant 2 : index
    %c1_210 = arith.constant 1 : index
    %596 = vector.load %arg7[%c2_209, %c1_210] : memref<4x273xf32, #tpu.memory_space<vmem>>, vector<1x256xf32>
    %597 = arith.mulf %596, %3 : vector<1x256xf32>
    %c9_211 = arith.constant 9 : index
    %598 = memref.load %arg1[%c9_211] : memref<64xf32, #tpu.memory_space<smem>>
    %599 = vector.broadcast %598 : f32 to vector<1x256xf32>
    %600 = arith.mulf %599, %597 : vector<1x256xf32>
    %601 = arith.addf %583, %600 : vector<1x256xf32>
    %c25_212 = arith.constant 25 : index
    %602 = memref.load %arg1[%c25_212] : memref<64xf32, #tpu.memory_space<smem>>
    %603 = vector.broadcast %602 : f32 to vector<1x256xf32>
    %604 = arith.mulf %603, %597 : vector<1x256xf32>
    %605 = arith.addf %587, %604 : vector<1x256xf32>
    %c41_213 = arith.constant 41 : index
    %606 = memref.load %arg1[%c41_213] : memref<64xf32, #tpu.memory_space<smem>>
    %607 = vector.broadcast %606 : f32 to vector<1x256xf32>
    %608 = arith.mulf %607, %597 : vector<1x256xf32>
    %609 = arith.addf %591, %608 : vector<1x256xf32>
    %c57_214 = arith.constant 57 : index
    %610 = memref.load %arg1[%c57_214] : memref<64xf32, #tpu.memory_space<smem>>
    %611 = vector.broadcast %610 : f32 to vector<1x256xf32>
    %612 = arith.mulf %611, %597 : vector<1x256xf32>
    %613 = arith.addf %595, %612 : vector<1x256xf32>
    %c2_215 = arith.constant 2 : index
    %c2_216 = arith.constant 2 : index
    %614 = vector.load %arg7[%c2_215, %c2_216] : memref<4x273xf32, #tpu.memory_space<vmem>>, vector<1x256xf32>
    %615 = arith.mulf %614, %5 : vector<1x256xf32>
    %c10_217 = arith.constant 10 : index
    %616 = memref.load %arg1[%c10_217] : memref<64xf32, #tpu.memory_space<smem>>
    %617 = vector.broadcast %616 : f32 to vector<1x256xf32>
    %618 = arith.mulf %617, %615 : vector<1x256xf32>
    %619 = arith.addf %601, %618 : vector<1x256xf32>
    %c26_218 = arith.constant 26 : index
    %620 = memref.load %arg1[%c26_218] : memref<64xf32, #tpu.memory_space<smem>>
    %621 = vector.broadcast %620 : f32 to vector<1x256xf32>
    %622 = arith.mulf %621, %615 : vector<1x256xf32>
    %623 = arith.addf %605, %622 : vector<1x256xf32>
    %c42_219 = arith.constant 42 : index
    %624 = memref.load %arg1[%c42_219] : memref<64xf32, #tpu.memory_space<smem>>
    %625 = vector.broadcast %624 : f32 to vector<1x256xf32>
    %626 = arith.mulf %625, %615 : vector<1x256xf32>
    %627 = arith.addf %609, %626 : vector<1x256xf32>
    %c58_220 = arith.constant 58 : index
    %628 = memref.load %arg1[%c58_220] : memref<64xf32, #tpu.memory_space<smem>>
    %629 = vector.broadcast %628 : f32 to vector<1x256xf32>
    %630 = arith.mulf %629, %615 : vector<1x256xf32>
    %631 = arith.addf %613, %630 : vector<1x256xf32>
    %c2_221 = arith.constant 2 : index
    %c16_222 = arith.constant 16 : index
    %632 = vector.load %arg7[%c2_221, %c16_222] : memref<4x273xf32, #tpu.memory_space<vmem>>, vector<1x256xf32>
    %633 = arith.mulf %632, %7 : vector<1x256xf32>
    %c11_223 = arith.constant 11 : index
    %634 = memref.load %arg1[%c11_223] : memref<64xf32, #tpu.memory_space<smem>>
    %635 = vector.broadcast %634 : f32 to vector<1x256xf32>
    %636 = arith.mulf %635, %633 : vector<1x256xf32>
    %637 = arith.addf %619, %636 : vector<1x256xf32>
    %c27_224 = arith.constant 27 : index
    %638 = memref.load %arg1[%c27_224] : memref<64xf32, #tpu.memory_space<smem>>
    %639 = vector.broadcast %638 : f32 to vector<1x256xf32>
    %640 = arith.mulf %639, %633 : vector<1x256xf32>
    %641 = arith.addf %623, %640 : vector<1x256xf32>
    %c43_225 = arith.constant 43 : index
    %642 = memref.load %arg1[%c43_225] : memref<64xf32, #tpu.memory_space<smem>>
    %643 = vector.broadcast %642 : f32 to vector<1x256xf32>
    %644 = arith.mulf %643, %633 : vector<1x256xf32>
    %645 = arith.addf %627, %644 : vector<1x256xf32>
    %c59_226 = arith.constant 59 : index
    %646 = memref.load %arg1[%c59_226] : memref<64xf32, #tpu.memory_space<smem>>
    %647 = vector.broadcast %646 : f32 to vector<1x256xf32>
    %648 = arith.mulf %647, %633 : vector<1x256xf32>
    %649 = arith.addf %631, %648 : vector<1x256xf32>
    %c3_227 = arith.constant 3 : index
    %c0_228 = arith.constant 0 : index
    %650 = vector.load %arg7[%c3_227, %c0_228] : memref<4x273xf32, #tpu.memory_space<vmem>>, vector<1x256xf32>
    %651 = arith.mulf %650, %1 : vector<1x256xf32>
    %c12_229 = arith.constant 12 : index
    %652 = memref.load %arg1[%c12_229] : memref<64xf32, #tpu.memory_space<smem>>
    %653 = vector.broadcast %652 : f32 to vector<1x256xf32>
    %654 = arith.mulf %653, %651 : vector<1x256xf32>
    %655 = arith.addf %637, %654 : vector<1x256xf32>
    %c28_230 = arith.constant 28 : index
    %656 = memref.load %arg1[%c28_230] : memref<64xf32, #tpu.memory_space<smem>>
    %657 = vector.broadcast %656 : f32 to vector<1x256xf32>
    %658 = arith.mulf %657, %651 : vector<1x256xf32>
    %659 = arith.addf %641, %658 : vector<1x256xf32>
    %c44_231 = arith.constant 44 : index
    %660 = memref.load %arg1[%c44_231] : memref<64xf32, #tpu.memory_space<smem>>
    %661 = vector.broadcast %660 : f32 to vector<1x256xf32>
    %662 = arith.mulf %661, %651 : vector<1x256xf32>
    %663 = arith.addf %645, %662 : vector<1x256xf32>
    %c60_232 = arith.constant 60 : index
    %664 = memref.load %arg1[%c60_232] : memref<64xf32, #tpu.memory_space<smem>>
    %665 = vector.broadcast %664 : f32 to vector<1x256xf32>
    %666 = arith.mulf %665, %651 : vector<1x256xf32>
    %667 = arith.addf %649, %666 : vector<1x256xf32>
    %c3_233 = arith.constant 3 : index
    %c1_234 = arith.constant 1 : index
    %668 = vector.load %arg7[%c3_233, %c1_234] : memref<4x273xf32, #tpu.memory_space<vmem>>, vector<1x256xf32>
    %669 = arith.mulf %668, %3 : vector<1x256xf32>
    %c13_235 = arith.constant 13 : index
    %670 = memref.load %arg1[%c13_235] : memref<64xf32, #tpu.memory_space<smem>>
    %671 = vector.broadcast %670 : f32 to vector<1x256xf32>
    %672 = arith.mulf %671, %669 : vector<1x256xf32>
    %673 = arith.addf %655, %672 : vector<1x256xf32>
    %c29_236 = arith.constant 29 : index
    %674 = memref.load %arg1[%c29_236] : memref<64xf32, #tpu.memory_space<smem>>
    %675 = vector.broadcast %674 : f32 to vector<1x256xf32>
    %676 = arith.mulf %675, %669 : vector<1x256xf32>
    %677 = arith.addf %659, %676 : vector<1x256xf32>
    %c45_237 = arith.constant 45 : index
    %678 = memref.load %arg1[%c45_237] : memref<64xf32, #tpu.memory_space<smem>>
    %679 = vector.broadcast %678 : f32 to vector<1x256xf32>
    %680 = arith.mulf %679, %669 : vector<1x256xf32>
    %681 = arith.addf %663, %680 : vector<1x256xf32>
    %c61_238 = arith.constant 61 : index
    %682 = memref.load %arg1[%c61_238] : memref<64xf32, #tpu.memory_space<smem>>
    %683 = vector.broadcast %682 : f32 to vector<1x256xf32>
    %684 = arith.mulf %683, %669 : vector<1x256xf32>
    %685 = arith.addf %667, %684 : vector<1x256xf32>
    %c3_239 = arith.constant 3 : index
    %c2_240 = arith.constant 2 : index
    %686 = vector.load %arg7[%c3_239, %c2_240] : memref<4x273xf32, #tpu.memory_space<vmem>>, vector<1x256xf32>
    %687 = arith.mulf %686, %5 : vector<1x256xf32>
    %c14_241 = arith.constant 14 : index
    %688 = memref.load %arg1[%c14_241] : memref<64xf32, #tpu.memory_space<smem>>
    %689 = vector.broadcast %688 : f32 to vector<1x256xf32>
    %690 = arith.mulf %689, %687 : vector<1x256xf32>
    %691 = arith.addf %673, %690 : vector<1x256xf32>
    %c30_242 = arith.constant 30 : index
    %692 = memref.load %arg1[%c30_242] : memref<64xf32, #tpu.memory_space<smem>>
    %693 = vector.broadcast %692 : f32 to vector<1x256xf32>
    %694 = arith.mulf %693, %687 : vector<1x256xf32>
    %695 = arith.addf %677, %694 : vector<1x256xf32>
    %c46_243 = arith.constant 46 : index
    %696 = memref.load %arg1[%c46_243] : memref<64xf32, #tpu.memory_space<smem>>
    %697 = vector.broadcast %696 : f32 to vector<1x256xf32>
    %698 = arith.mulf %697, %687 : vector<1x256xf32>
    %699 = arith.addf %681, %698 : vector<1x256xf32>
    %c62_244 = arith.constant 62 : index
    %700 = memref.load %arg1[%c62_244] : memref<64xf32, #tpu.memory_space<smem>>
    %701 = vector.broadcast %700 : f32 to vector<1x256xf32>
    %702 = arith.mulf %701, %687 : vector<1x256xf32>
    %703 = arith.addf %685, %702 : vector<1x256xf32>
    %c3_245 = arith.constant 3 : index
    %c16_246 = arith.constant 16 : index
    %704 = vector.load %arg7[%c3_245, %c16_246] : memref<4x273xf32, #tpu.memory_space<vmem>>, vector<1x256xf32>
    %705 = arith.mulf %704, %7 : vector<1x256xf32>
    %c15_247 = arith.constant 15 : index
    %706 = memref.load %arg1[%c15_247] : memref<64xf32, #tpu.memory_space<smem>>
    %707 = vector.broadcast %706 : f32 to vector<1x256xf32>
    %708 = arith.mulf %707, %705 : vector<1x256xf32>
    %709 = arith.addf %691, %708 : vector<1x256xf32>
    %c31_248 = arith.constant 31 : index
    %710 = memref.load %arg1[%c31_248] : memref<64xf32, #tpu.memory_space<smem>>
    %711 = vector.broadcast %710 : f32 to vector<1x256xf32>
    %712 = arith.mulf %711, %705 : vector<1x256xf32>
    %713 = arith.addf %695, %712 : vector<1x256xf32>
    %c47_249 = arith.constant 47 : index
    %714 = memref.load %arg1[%c47_249] : memref<64xf32, #tpu.memory_space<smem>>
    %715 = vector.broadcast %714 : f32 to vector<1x256xf32>
    %716 = arith.mulf %715, %705 : vector<1x256xf32>
    %717 = arith.addf %699, %716 : vector<1x256xf32>
    %c63_250 = arith.constant 63 : index
    %718 = memref.load %arg1[%c63_250] : memref<64xf32, #tpu.memory_space<smem>>
    %719 = vector.broadcast %718 : f32 to vector<1x256xf32>
    %720 = arith.mulf %719, %705 : vector<1x256xf32>
    %721 = arith.addf %703, %720 : vector<1x256xf32>
    %cst_251 = arith.constant 0.000000e+00 : f32
    %722 = vector.broadcast %cst_251 : f32 to vector<1x256xf32>
    %723 = arith.maximumf %709, %722 : vector<1x256xf32>
    %c1_252 = arith.constant 1 : index
    %c0_253 = arith.constant 0 : index
    %c0_254 = arith.constant 0 : index
    %724 = vector.load %arg6[%c1_252, %c0_253, %c0_254] : memref<2x4x256xf32, #tpu.memory_space<vmem>>, vector<1x1x256xf32>
    %725 = vector.shape_cast %724 : vector<1x1x256xf32> to vector<1x256xf32>
    %726 = vector.shape_cast %723 : vector<1x256xf32> to vector<1x1x256xf32>
    tpu.vector_store %arg6[%c1_252, %c0_253, %c0_254], %726 {strides = array<i32>} : memref<2x4x256xf32, #tpu.memory_space<vmem>>, vector<1x1x256xf32>,
    %cst_255 = arith.constant 0.000000e+00 : f32
    %727 = vector.broadcast %cst_255 : f32 to vector<1x256xf32>
    %728 = arith.maximumf %713, %727 : vector<1x256xf32>
    %c1_256 = arith.constant 1 : index
    %c1_257 = arith.constant 1 : index
    %c0_258 = arith.constant 0 : index
    %729 = vector.load %arg6[%c1_256, %c1_257, %c0_258] : memref<2x4x256xf32, #tpu.memory_space<vmem>>, vector<1x1x256xf32>
    %730 = vector.shape_cast %729 : vector<1x1x256xf32> to vector<1x256xf32>
    %731 = vector.shape_cast %728 : vector<1x256xf32> to vector<1x1x256xf32>
    tpu.vector_store %arg6[%c1_256, %c1_257, %c0_258], %731 {strides = array<i32>} : memref<2x4x256xf32, #tpu.memory_space<vmem>>, vector<1x1x256xf32>,
    %cst_259 = arith.constant 0.000000e+00 : f32
    %732 = vector.broadcast %cst_259 : f32 to vector<1x256xf32>
    %733 = arith.maximumf %717, %732 : vector<1x256xf32>
    %c1_260 = arith.constant 1 : index
    %c2_261 = arith.constant 2 : index
    %c0_262 = arith.constant 0 : index
    %734 = vector.load %arg6[%c1_260, %c2_261, %c0_262] : memref<2x4x256xf32, #tpu.memory_space<vmem>>, vector<1x1x256xf32>
    %735 = vector.shape_cast %734 : vector<1x1x256xf32> to vector<1x256xf32>
    %736 = vector.shape_cast %733 : vector<1x256xf32> to vector<1x1x256xf32>
    tpu.vector_store %arg6[%c1_260, %c2_261, %c0_262], %736 {strides = array<i32>} : memref<2x4x256xf32, #tpu.memory_space<vmem>>, vector<1x1x256xf32>,
    %cst_263 = arith.constant 0.000000e+00 : f32
    %737 = vector.broadcast %cst_263 : f32 to vector<1x256xf32>
    %738 = arith.maximumf %721, %737 : vector<1x256xf32>
    %c1_264 = arith.constant 1 : index
    %c3_265 = arith.constant 3 : index
    %c0_266 = arith.constant 0 : index
    %739 = vector.load %arg6[%c1_264, %c3_265, %c0_266] : memref<2x4x256xf32, #tpu.memory_space<vmem>>, vector<1x1x256xf32>
    %740 = vector.shape_cast %739 : vector<1x1x256xf32> to vector<1x256xf32>
    %741 = vector.shape_cast %738 : vector<1x256xf32> to vector<1x1x256xf32>
    tpu.vector_store %arg6[%c1_264, %c3_265, %c0_266], %741 {strides = array<i32>} : memref<2x4x256xf32, #tpu.memory_space<vmem>>, vector<1x1x256xf32>,
    return
  }
}

</mosaic_0001>

<llo_original>
// kernel: tpu_custom_call.1
$region0: #{tpu_custom_call.1}
  #allocation0 [shape = 'u32[]', space=smem, size = 0x4, offset = 0x4, fixed_abs, tag = 'smem constant byte address 0x4 - core index']
  #allocation1 [shape = 'u32[72,128]{1,0:T(1,128)}', space=vmem, size = 0x9000, scoped, tag = 'internal scratch']
  #allocation2 [shape = 'f32[4,273]{1,0:T(4,128)}', space=vmem, size = 0x1800, scoped, tag = 'scratch operand']
  %s0 = inlined_call_operand.hbm [shape: f32[2,8], index: 0, kind: input, shape index: {}]
  %s1 = inlined_call_operand.hbm [shape: f32[64], index: 1, kind: input, shape index: {}]
  %s2 = inlined_call_operand.vmem [shape: f32[4], index: 2, kind: input, shape index: {}]
  %s3 = inlined_call_operand.hbm [shape: f32[8,4,273], index: 3, kind: input, shape index: {}]
  %s4 = inlined_call_operand.hbm [shape: f32[4,273], index: 4, kind: input, shape index: {}]
  %s5 = inlined_call_operand.hbm [shape: f32[4,1,256], index: 5, kind: input, shape index: {}]
  %s6 = inlined_call_operand.hbm [shape: f32[2,4,256], index: 6, kind: output, shape index: {}]
  %s7 = sld [smem:[#allocation0]]
  $region58: #{tpu_custom_call.1} parent=0
    _
  %s9 = ssub.s32 1, %s7
  %s10 = scalar_select 0, %s9, %s7
  $region1: #{tpu_custom_call.1} parent=0
    #allocation3 [shape = 'u8[1024]{0}', space=smem, size = 0x400, scoped, tag = 'input window, operand 0, single buffered']
    #allocation4 [shape = 's32[1]{0}', space=sflag, size = 0x4, scoped, tag = 'scoped memory for tpu_custom_call.1']
    #allocation5 [shape = 's32[1]{0}', space=sflag, size = 0x4, scoped, tag = 'scoped memory for tpu_custom_call.1']
    #allocation6 [shape = 's32[1]{0}', space=sflag, size = 0x4, scoped, tag = 'scoped memory for tpu_custom_call.1']
    #allocation7 [shape = 's32[1]{0}', space=sflag, size = 0x4, scoped, tag = 'scoped memory for tpu_custom_call.1']
    #allocation8 [shape = 'u8[512]{0}', space=smem, size = 0x200, scoped, tag = 'input window, operand 1, single buffered']
    #allocation9 [shape = 's32[1]{0}', space=sflag, size = 0x4, scoped, tag = 'scoped memory for tpu_custom_call.1']
    #allocation10 [shape = 'u8[512]{0}', space=smem, size = 0x200, scoped, tag = 'input window, operand 2, single buffered']
    #allocation11 [shape = 'u8[49152]{0}', space=vmem, size = 0xc000, scoped, tag = 'input window, operand 3, single buffered']
    #allocation12 [shape = 'u8[6144]{0}', space=vmem, size = 0x1800, scoped, tag = 'input window, operand 4, single buffered']
    #allocation13 [shape = 's32[1]{0}', space=sflag, size = 0x4, scoped, tag = 'scoped memory for tpu_custom_call.1']
    #allocation14 [shape = 'u8[4096]{0}', space=vmem, size = 0x1000, scoped, tag = 'input window, operand 5, single buffered']
    #allocation15 [shape = 'u8[8192]{0}', space=vmem, size = 0x2000, scoped, tag = 'output window, operand 0, single buffered']
    %11 = vsyncpa [#allocation6], 0
    %12 = vsyncpa [#allocation9], 0
    %13 = vsyncpa [#allocation7], 0
    %14 = vsyncpa [#allocation4], 0
    %15 = vsyncpa [#allocation13], 0
    %16 = vsyncpa [#allocation5], 0
    // Predicated region
    $region2: #{tpu_custom_call.1} parent=1 // pred_check
      _
    $region3: #{tpu_custom_call.1} parent=1 // pred_check_branch
      %18 = sbr.rel (0) target = $region5
    $region4: #{tpu_custom_call.1} parent=1 // pred_region
      %20 = vsyncadd [#allocation6], 0
      %s22 = sshll.u32 %s0, 4
      %s23 = int_to_ptr.hbm [resolvable:$true] %s22
      %25 = dma.hbm_to_smem %s23, 32, [#allocation3], [#allocation6]
    $region5: #{tpu_custom_call.1} parent=1 // pred_fallthru
      _
    // Predicated region
    $region6: #{tpu_custom_call.1} parent=1 // pred_check
      _
    $region7: #{tpu_custom_call.1} parent=1 // pred_check_branch
      %27 = sbr.rel (0) target = $region9
    $region8: #{tpu_custom_call.1} parent=1 // pred_region
      %29 = vsyncadd [#allocation9], 0
      %s31 = sshll.u32 %s1, 4
      %s32 = int_to_ptr.hbm [resolvable:$true] %s31
      %34 = dma.hbm_to_smem %s32, 16, [#allocation8], [#allocation9]
    $region9: #{tpu_custom_call.1} parent=1 // pred_fallthru
      _
    // Predicated region
    $region10: #{tpu_custom_call.1} parent=1 // pred_check
      _
    $region11: #{tpu_custom_call.1} parent=1 // pred_check_branch
      %36 = sbr.rel (0) target = $region13
    $region12: #{tpu_custom_call.1} parent=1 // pred_region
      %38 = vsyncadd [#allocation7], 0
      %s40 = sshll.u32 %s2, 4
      %s41 = int_to_ptr.vmem [resolvable:$true] %s40
      %43 = dma.vmem_to_smem %s41, 16, [#allocation10], [#allocation7]
    $region13: #{tpu_custom_call.1} parent=1 // pred_fallthru
      _
    // Predicated region
    $region14: #{tpu_custom_call.1} parent=1 // pred_check
      _
    $region15: #{tpu_custom_call.1} parent=1 // pred_check_branch
      %45 = sbr.rel (0) target = $region17
    $region16: #{tpu_custom_call.1} parent=1 // pred_region
      %47 = vsyncadd [#allocation4], 0
      %s48 = sshll.u32 %s3, 4
      %s49 = int_to_ptr.hbm [resolvable:$true] %s48
      %s50 = sshll.u32 [#allocation11], 4
      %s51 = int_to_ptr.vmem [resolvable:$true] %s50
      %56 = dma.hbm_to_vmem [thread:$0]  %s49, 1536, %s51, [#allocation4], 192, 192, 12
    $region17: #{tpu_custom_call.1} parent=1 // pred_fallthru
      _
    // Predicated region
    $region18: #{tpu_custom_call.1} parent=1 // pred_check
      _
    $region19: #{tpu_custom_call.1} parent=1 // pred_check_branch
      %58 = sbr.rel (0) target = $region21
    $region20: #{tpu_custom_call.1} parent=1 // pred_region
      %60 = vsyncadd [#allocation13], 0
      %s62 = sshll.u32 %s4, 4
      %s63 = int_to_ptr.hbm [resolvable:$true] %s62
      %s64 = sshll.u32 [#allocation12], 4
      %s65 = int_to_ptr.vmem [resolvable:$true] %s64
      %67 = dma.hbm_to_vmem [thread:$0]  %s63, 192, %s65, [#allocation13]
    $region21: #{tpu_custom_call.1} parent=1 // pred_fallthru
      _
    // Predicated region
    $region22: #{tpu_custom_call.1} parent=1 // pred_check
      _
    $region23: #{tpu_custom_call.1} parent=1 // pred_check_branch
      %69 = sbr.rel (0) target = $region25
    $region24: #{tpu_custom_call.1} parent=1 // pred_region
      %71 = vsyncadd [#allocation13], 0
      %s72 = sshll.u32 %s5, 4
      %s73 = int_to_ptr.hbm [resolvable:$true] %s72
      %s74 = sshll.u32 [#allocation14], 4
      %s75 = int_to_ptr.vmem [resolvable:$true] %s74
      %80 = dma.hbm_to_vmem [thread:$0]  %s73, 128, %s75, [#allocation13], 32, 32, 2
    $region25: #{tpu_custom_call.1} parent=1 // pred_fallthru
      _
    // Predicated region
    $region26: #{tpu_custom_call.1} parent=1 // pred_check
      _
    $region27: #{tpu_custom_call.1} parent=1 // pred_check_branch
      %82 = sbr.rel (0) target = $region29
    $region28: #{tpu_custom_call.1} parent=1 // pred_region
      %84 = dma.done [#allocation6], 32
    $region29: #{tpu_custom_call.1} parent=1 // pred_fallthru
      _
    // Predicated region
    $region30: #{tpu_custom_call.1} parent=1 // pred_check
      _
    $region31: #{tpu_custom_call.1} parent=1 // pred_check_branch
      %86 = sbr.rel (0) target = $region33
    $region32: #{tpu_custom_call.1} parent=1 // pred_region
      %88 = dma.done [#allocation9], 16
    $region33: #{tpu_custom_call.1} parent=1 // pred_fallthru
      _
    // Predicated region
    $region34: #{tpu_custom_call.1} parent=1 // pred_check
      _
    $region35: #{tpu_custom_call.1} parent=1 // pred_check_branch
      %90 = sbr.rel (0) target = $region37
    $region36: #{tpu_custom_call.1} parent=1 // pred_region
      %92 = dma.done [#allocation7], 16
    $region37: #{tpu_custom_call.1} parent=1 // pred_fallthru
      _
    // Predicated region
    $region38: #{tpu_custom_call.1} parent=1 // pred_check
      _
    $region39: #{tpu_custom_call.1} parent=1 // pred_check_branch
      %94 = sbr.rel (0) target = $region41
    $region40: #{tpu_custom_call.1} parent=1 // pred_region
      %96 = dma.done [#allocation4], 1536
    $region41: #{tpu_custom_call.1} parent=1 // pred_fallthru
      _
    // Predicated region
    $region42: #{tpu_custom_call.1} parent=1 // pred_check
      _
    $region43: #{tpu_custom_call.1} parent=1 // pred_check_branch
      %98 = sbr.rel (0) target = $region45
    $region44: #{tpu_custom_call.1} parent=1 // pred_region
      %100 = dma.done [#allocation13], 192
    $region45: #{tpu_custom_call.1} parent=1 // pred_fallthru
      _
    // Predicated region
    $region46: #{tpu_custom_call.1} parent=1 // pred_check
      _
    $region47: #{tpu_custom_call.1} parent=1 // pred_check_branch
      %102 = sbr.rel (0) target = $region49
    $region48: #{tpu_custom_call.1} parent=1 // pred_region
      %104 = dma.done [#allocation13], 128
    $region49: #{tpu_custom_call.1} parent=1 // pred_fallthru
      _
    %105 = sfence
    %v106 = vld [vmem:[#allocation14] sm:$0x3]
    %s107 = scalar_lea.vmem [#allocation14], 2
    %v108 = vld [vmem:[%s107] sm:$0x3]
    %s109 = scalar_lea.vmem [#allocation14], 4
    %v110 = vld [vmem:[%s109] sm:$0x3]
    %s111 = scalar_lea.vmem [#allocation14], 6
    %v112 = vld [vmem:[%s111] sm:$0x3]
    %v113 = vld [vmem:[#allocation12] sm:$0xff]
    %v114 = vld [vmem:[#allocation12 + $0x8] sm:$0xf]
    %s115 = sld [smem:[#allocation3]]
    %v116 = vld [vmem:[#allocation11] sm:$0xff]
    %v117 = vld [vmem:[#allocation11 + $0x8] sm:$0xf]
    %v118 = vstv %s115
    %v119 = vmul.f32 %v118, %v116
    %v120 = vmul.f32 %v118, %v117
    %v121 = vadd.f32 %v113, %v119
    %v122 = vadd.f32 %v114, %v120
    %s123 = sld [smem:[#allocation3 + $0x1]]
    %s124 = scalar_lea.vmem [#allocation11], 12
    %v125 = vld [vmem:[%s124] sm:$0xff]
    %v126 = vld [vmem:[%s124 + $0x8] sm:$0xf]
    %v127 = vstv %s123
    %v128 = vmul.f32 %v127, %v125
    %v129 = vmul.f32 %v127, %v126
    %v130 = vadd.f32 %v121, %v128
    %v131 = vadd.f32 %v122, %v129
    %s132 = sld [smem:[#allocation3 + $0x2]]
    %s133 = scalar_lea.vmem [#allocation11], 24
    %v134 = vld [vmem:[%s133] sm:$0xff]
    %v135 = vld [vmem:[%s133 + $0x8] sm:$0xf]
    %v136 = vstv %s132
    %v137 = vmul.f32 %v136, %v134
    %v138 = vmul.f32 %v136, %v135
    %v139 = vadd.f32 %v130, %v137
    %v140 = vadd.f32 %v131, %v138
    %s141 = sld [smem:[#allocation3 + $0x3]]
    %s142 = scalar_lea.vmem [#allocation11], 36
    %v143 = vld [vmem:[%s142] sm:$0xff]
    %v144 = vld [vmem:[%s142 + $0x8] sm:$0xf]
    %v145 = vstv %s141
    %v146 = vmul.f32 %v145, %v143
    %v147 = vmul.f32 %v145, %v144
    %v148 = vadd.f32 %v139, %v146
    %v149 = vadd.f32 %v140, %v147
    %s150 = sld [smem:[#allocation3 + $0x4]]
    %s151 = scalar_lea.vmem [#allocation11], 48
    %v152 = vld [vmem:[%s151] sm:$0xff]
    %v153 = vld [vmem:[%s151 + $0x8] sm:$0xf]
    %v154 = vstv %s150
    %v155 = vmul.f32 %v154, %v152
    %v156 = vmul.f32 %v154, %v153
    %v157 = vadd.f32 %v148, %v155
    %v158 = vadd.f32 %v149, %v156
    %s159 = sld [smem:[#allocation3 + $0x5]]
    %s160 = scalar_lea.vmem [#allocation11], 60
    %v161 = vld [vmem:[%s160] sm:$0xff]
    %v162 = vld [vmem:[%s160 + $0x8] sm:$0xf]
    %v163 = vstv %s159
    %v164 = vmul.f32 %v163, %v161
    %v165 = vmul.f32 %v163, %v162
    %v166 = vadd.f32 %v157, %v164
    %v167 = vadd.f32 %v158, %v165
    %s168 = sld [smem:[#allocation3 + $0x6]]
    %s169 = scalar_lea.vmem [#allocation11], 72
    %v170 = vld [vmem:[%s169] sm:$0xff]
    %v171 = vld [vmem:[%s169 + $0x8] sm:$0xf]
    %v172 = vstv %s168
    %v173 = vmul.f32 %v172, %v170
    %v174 = vmul.f32 %v172, %v171
    %v175 = vadd.f32 %v166, %v173
    %v176 = vadd.f32 %v167, %v174
    %s177 = sld [smem:[#allocation3 + $0x7]]
    %s178 = scalar_lea.vmem [#allocation11], 84
    %v179 = vld [vmem:[%s178] sm:$0xff]
    %v180 = vld [vmem:[%s178 + $0x8] sm:$0xf]
    %v181 = vstv %s177
    %v182 = vmul.f32 %v181, %v179
    %v183 = vmul.f32 %v181, %v180
    %v184 = vadd.f32 %v175, %v182
    %v185 = vadd.f32 %v176, %v183
    %v186 = vtanh.pop %v184
    %v187 = vtanh.pop %v185
    %188 = vst [vmem:[#allocation2] sm:$0xff] %v186
    %vm189 = vcmask 134144
    %190 = vst.msk [vmem:[#allocation2 + $0x8] sm:$0xf] %vm189, %v187
    %s191 = sld [smem:[#allocation10]]
    %v192 = vstv %s191
    %s193 = sld [smem:[#allocation10 + $0x1]]
    %v194 = vstv %s193
    %s195 = sld [smem:[#allocation10 + $0x2]]
    %v196 = vstv %s195
    %s197 = sld [smem:[#allocation10 + $0x3]]
    %v198 = vstv %s197
    %v199 = vld [vmem:[#allocation2] ss:$4 sm:$0x3]
    %v200 = vmul.f32 %v199, %v106
    %s201 = sld [smem:[#allocation8]]
    %v202 = vstv %s201
    %v203 = vmul.f32 %v202, %v200
    %v204 = vadd.f32 %v192, %v203
    %s205 = sld [smem:[#allocation8 + $0x10]]
    %v206 = vstv %s205
    %v207 = vmul.f32 %v206, %v200
    %v208 = vadd.f32 %v194, %v207
    %s209 = sld [smem:[#allocation8 + $0x20]]
    %v210 = vstv %s209
    %v211 = vmul.f32 %v210, %v200
    %v212 = vadd.f32 %v196, %v211
    %s213 = sld [smem:[#allocation8 + $0x30]]
    %v214 = vstv %s213
    %v215 = vmul.f32 %v214, %v200
    %v216 = vadd.f32 %v198, %v215
    %v217 = vld [vmem:[#allocation2] ss:$4 sm:$0x7]
    %219 = vrot.lane.b32.xlu0 %v108, 1
    %v220 = vpop.permute.xlu0 %219
    %v221 = vrot.slane %v220, 7
    %vm222 = vcmask 7168
    %v223 = vsel %vm222, %v221, %v220
    %v225 = vmul.f32 %v217, %v223
    %s226 = sld [smem:[#allocation8 + $0x1]]
    %v227 = vstv %s226
    %v228 = vmul.f32 %v227, %v225
    %230 = vrot.lane.b32.xlu0 %v228, 127
    %v231 = vpop.permute.xlu0 %230
    %v232 = vrot.slane %v231, 1
    %vm233 = vcmask 1039360
    %v234 = vsel %vm233, %v231, %v232
    %v236 = vadd.f32 %v204, %v234
    %s237 = sld [smem:[#allocation8 + $0x11]]
    %v238 = vstv %s237
    %v239 = vmul.f32 %v238, %v225
    %241 = vrot.lane.b32.xlu0 %v239, 127
    %v242 = vpop.permute.xlu0 %241
    %v243 = vrot.slane %v242, 1
    %v244 = vsel %vm233, %v242, %v243
    %v246 = vadd.f32 %v208, %v244
    %s247 = sld [smem:[#allocation8 + $0x21]]
    %v248 = vstv %s247
    %v249 = vmul.f32 %v248, %v225
    %251 = vrot.lane.b32.xlu0 %v249, 127
    %v252 = vpop.permute.xlu0 %251
    %v253 = vrot.slane %v252, 1
    %v254 = vsel %vm233, %v252, %v253
    %v256 = vadd.f32 %v212, %v254
    %s257 = sld [smem:[#allocation8 + $0x31]]
    %v258 = vstv %s257
    %v259 = vmul.f32 %v258, %v225
    %261 = vrot.lane.b32.xlu0 %v259, 127
    %v262 = vpop.permute.xlu0 %261
    %v263 = vrot.slane %v262, 1
    %v264 = vsel %vm233, %v262, %v263
    %v266 = vadd.f32 %v216, %v264
    %268 = vrot.lane.b32.xlu0 %v110, 2
    %v269 = vpop.permute.xlu0 %268
    %v270 = vrot.slane %v269, 7
    %vm271 = vcmask 15360
    %v272 = vsel %vm271, %v270, %v269
    %v274 = vmul.f32 %v217, %v272
    %s275 = sld [smem:[#allocation8 + $0x2]]
    %v276 = vstv %s275
    %v277 = vmul.f32 %v276, %v274
    %279 = vrot.lane.b32.xlu0 %v277, 126
    %v280 = vpop.permute.xlu0 %279
    %v281 = vrot.slane %v280, 1
    %vm282 = vcmask 1031168
    %v283 = vsel %vm282, %v280, %v281
    %v285 = vadd.f32 %v236, %v283
    %s286 = sld [smem:[#allocation8 + $0x12]]
    %v287 = vstv %s286
    %v288 = vmul.f32 %v287, %v274
    %290 = vrot.lane.b32.xlu0 %v288, 126
    %v291 = vpop.permute.xlu0 %290
    %v292 = vrot.slane %v291, 1
    %v293 = vsel %vm282, %v291, %v292
    %v295 = vadd.f32 %v246, %v293
    %s296 = sld [smem:[#allocation8 + $0x22]]
    %v297 = vstv %s296
    %v298 = vmul.f32 %v297, %v274
    %300 = vrot.lane.b32.xlu0 %v298, 126
    %v301 = vpop.permute.xlu0 %300
    %v302 = vrot.slane %v301, 1
    %v303 = vsel %vm282, %v301, %v302
    %v305 = vadd.f32 %v256, %v303
    %s306 = sld [smem:[#allocation8 + $0x32]]
    %v307 = vstv %s306
    %v308 = vmul.f32 %v307, %v274
    %310 = vrot.lane.b32.xlu0 %v308, 126
    %v311 = vpop.permute.xlu0 %310
    %v312 = vrot.slane %v311, 1
    %v313 = vsel %vm282, %v311, %v312
    %v315 = vadd.f32 %v266, %v313
    %317 = vrot.lane.b32.xlu0 %v112, 16
    %v318 = vpop.permute.xlu0 %317
    %v319 = vrot.slane %v318, 7
    %vm320 = vcmask 130048
    %v321 = vsel %vm320, %v319, %v318
    %v323 = vmul.f32 %v217, %v321
    %s324 = sld [smem:[#allocation8 + $0x3]]
    %v325 = vstv %s324
    %v326 = vmul.f32 %v325, %v323
    %328 = vrot.lane.b32.xlu0 %v326, 112
    %v329 = vpop.permute.xlu0 %328
    %v330 = vrot.slane %v329, 1
    %vm331 = vcmask 916480
    %v332 = vsel %vm331, %v329, %v330
    %v334 = vadd.f32 %v285, %v332
    %s335 = sld [smem:[#allocation8 + $0x13]]
    %v336 = vstv %s335
    %v337 = vmul.f32 %v336, %v323
    %339 = vrot.lane.b32.xlu0 %v337, 112
    %v340 = vpop.permute.xlu0 %339
    %v341 = vrot.slane %v340, 1
    %v342 = vsel %vm331, %v340, %v341
    %v344 = vadd.f32 %v295, %v342
    %s345 = sld [smem:[#allocation8 + $0x23]]
    %v346 = vstv %s345
    %v347 = vmul.f32 %v346, %v323
    %349 = vrot.lane.b32.xlu0 %v347, 112
    %v350 = vpop.permute.xlu0 %349
    %v351 = vrot.slane %v350, 1
    %v352 = vsel %vm331, %v350, %v351
    %v354 = vadd.f32 %v305, %v352
    %s355 = sld [smem:[#allocation8 + $0x33]]
    %v356 = vstv %s355
    %v357 = vmul.f32 %v356, %v323
    %359 = vrot.lane.b32.xlu0 %v357, 112
    %v360 = vpop.permute.xlu0 %359
    %v361 = vrot.slane %v360, 1
    %v362 = vsel %vm331, %v360, %v361
    %v364 = vadd.f32 %v315, %v362
    %s365 = scalar_lea.vmem [#allocation2], 1
    %v366 = vld [vmem:[%s365] ss:$4 sm:$0x3]
    %v367 = vmul.f32 %v366, %v106
    %s368 = sld [smem:[#allocation8 + $0x4]]
    %v369 = vstv %s368
    %v370 = vmul.f32 %v369, %v367
    %v371 = vadd.f32 %v334, %v370
    %s372 = sld [smem:[#allocation8 + $0x14]]
    %v373 = vstv %s372
    %v374 = vmul.f32 %v373, %v367
    %v375 = vadd.f32 %v344, %v374
    %s376 = sld [smem:[#allocation8 + $0x24]]
    %v377 = vstv %s376
    %v378 = vmul.f32 %v377, %v367
    %v379 = vadd.f32 %v354, %v378
    %s380 = sld [smem:[#allocation8 + $0x34]]
    %v381 = vstv %s380
    %v382 = vmul.f32 %v381, %v367
    %v383 = vadd.f32 %v364, %v382
    %v384 = vld [vmem:[%s365] ss:$4 sm:$0x7]
    %v385 = vmul.f32 %v384, %v223
    %s386 = sld [smem:[#allocation8 + $0x5]]
    %v387 = vstv %s386
    %v388 = vmul.f32 %v387, %v385
    %390 = vrot.lane.b32.xlu0 %v388, 127
    %v391 = vpop.permute.xlu0 %390
    %v392 = vrot.slane %v391, 1
    %v393 = vsel %vm233, %v391, %v392
    %v395 = vadd.f32 %v371, %v393
    %s396 = sld [smem:[#allocation8 + $0x15]]
    %v397 = vstv %s396
    %v398 = vmul.f32 %v397, %v385
    %400 = vrot.lane.b32.xlu0 %v398, 127
    %v401 = vpop.permute.xlu0 %400
    %v402 = vrot.slane %v401, 1
    %v403 = vsel %vm233, %v401, %v402
    %v405 = vadd.f32 %v375, %v403
    %s406 = sld [smem:[#allocation8 + $0x25]]
    %v407 = vstv %s406
    %v408 = vmul.f32 %v407, %v385
    %410 = vrot.lane.b32.xlu0 %v408, 127
    %v411 = vpop.permute.xlu0 %410
    %v412 = vrot.slane %v411, 1
    %v413 = vsel %vm233, %v411, %v412
    %v415 = vadd.f32 %v379, %v413
    %s416 = sld [smem:[#allocation8 + $0x35]]
    %v417 = vstv %s416
    %v418 = vmul.f32 %v417, %v385
    %420 = vrot.lane.b32.xlu0 %v418, 127
    %v421 = vpop.permute.xlu0 %420
    %v422 = vrot.slane %v421, 1
    %v423 = vsel %vm233, %v421, %v422
    %v425 = vadd.f32 %v383, %v423
    %v426 = vmul.f32 %v384, %v272
    %s427 = sld [smem:[#allocation8 + $0x6]]
    %v428 = vstv %s427
    %v429 = vmul.f32 %v428, %v426
    %431 = vrot.lane.b32.xlu0 %v429, 126
    %v432 = vpop.permute.xlu0 %431
    %v433 = vrot.slane %v432, 1
    %v434 = vsel %vm282, %v432, %v433
    %v436 = vadd.f32 %v395, %v434
    %s437 = sld [smem:[#allocation8 + $0x16]]
    %v438 = vstv %s437
    %v439 = vmul.f32 %v438, %v426
    %441 = vrot.lane.b32.xlu0 %v439, 126
    %v442 = vpop.permute.xlu0 %441
    %v443 = vrot.slane %v442, 1
    %v444 = vsel %vm282, %v442, %v443
    %v446 = vadd.f32 %v405, %v444
    %s447 = sld [smem:[#allocation8 + $0x26]]
    %v448 = vstv %s447
    %v449 = vmul.f32 %v448, %v426
    %451 = vrot.lane.b32.xlu0 %v449, 126
    %v452 = vpop.permute.xlu0 %451
    %v453 = vrot.slane %v452, 1
    %v454 = vsel %vm282, %v452, %v453
    %v456 = vadd.f32 %v415, %v454
    %s457 = sld [smem:[#allocation8 + $0x36]]
    %v458 = vstv %s457
    %v459 = vmul.f32 %v458, %v426
    %461 = vrot.lane.b32.xlu0 %v459, 126
    %v462 = vpop.permute.xlu0 %461
    %v463 = vrot.slane %v462, 1
    %v464 = vsel %vm282, %v462, %v463
    %v466 = vadd.f32 %v425, %v464
    %v467 = vmul.f32 %v384, %v321
    %s468 = sld [smem:[#allocation8 + $0x7]]
    %v469 = vstv %s468
    %v470 = vmul.f32 %v469, %v467
    %472 = vrot.lane.b32.xlu0 %v470, 112
    %v473 = vpop.permute.xlu0 %472
    %v474 = vrot.slane %v473, 1
    %v475 = vsel %vm331, %v473, %v474
    %v477 = vadd.f32 %v436, %v475
    %s478 = sld [smem:[#allocation8 + $0x17]]
    %v479 = vstv %s478
    %v480 = vmul.f32 %v479, %v467
    %482 = vrot.lane.b32.xlu0 %v480, 112
    %v483 = vpop.permute.xlu0 %482
    %v484 = vrot.slane %v483, 1
    %v485 = vsel %vm331, %v483, %v484
    %v487 = vadd.f32 %v446, %v485
    %s488 = sld [smem:[#allocation8 + $0x27]]
    %v489 = vstv %s488
    %v490 = vmul.f32 %v489, %v467
    %492 = vrot.lane.b32.xlu0 %v490, 112
    %v493 = vpop.permute.xlu0 %492
    %v494 = vrot.slane %v493, 1
    %v495 = vsel %vm331, %v493, %v494
    %v497 = vadd.f32 %v456, %v495
    %s498 = sld [smem:[#allocation8 + $0x37]]
    %v499 = vstv %s498
    %v500 = vmul.f32 %v499, %v467
    %502 = vrot.lane.b32.xlu0 %v500, 112
    %v503 = vpop.permute.xlu0 %502
    %v504 = vrot.slane %v503, 1
    %v505 = vsel %vm331, %v503, %v504
    %v507 = vadd.f32 %v466, %v505
    %s508 = scalar_lea.vmem [#allocation2], 2
    %v509 = vld [vmem:[%s508] ss:$4 sm:$0x3]
    %v510 = vmul.f32 %v509, %v106
    %s511 = sld [smem:[#allocation8 + $0x8]]
    %v512 = vstv %s511
    %v513 = vmul.f32 %v512, %v510
    %v514 = vadd.f32 %v477, %v513
    %s515 = sld [smem:[#allocation8 + $0x18]]
    %v516 = vstv %s515
    %v517 = vmul.f32 %v516, %v510
    %v518 = vadd.f32 %v487, %v517
    %s519 = sld [smem:[#allocation8 + $0x28]]
    %v520 = vstv %s519
    %v521 = vmul.f32 %v520, %v510
    %v522 = vadd.f32 %v497, %v521
    %s523 = sld [smem:[#allocation8 + $0x38]]
    %v524 = vstv %s523
    %v525 = vmul.f32 %v524, %v510
    %v526 = vadd.f32 %v507, %v525
    %v527 = vld [vmem:[%s508] ss:$4 sm:$0x7]
    %v528 = vmul.f32 %v527, %v223
    %s529 = sld [smem:[#allocation8 + $0x9]]
    %v530 = vstv %s529
    %v531 = vmul.f32 %v530, %v528
    %533 = vrot.lane.b32.xlu0 %v531, 127
    %v534 = vpop.permute.xlu0 %533
    %v535 = vrot.slane %v534, 1
    %v536 = vsel %vm233, %v534, %v535
    %v538 = vadd.f32 %v514, %v536
    %s539 = sld [smem:[#allocation8 + $0x19]]
    %v540 = vstv %s539
    %v541 = vmul.f32 %v540, %v528
    %543 = vrot.lane.b32.xlu0 %v541, 127
    %v544 = vpop.permute.xlu0 %543
    %v545 = vrot.slane %v544, 1
    %v546 = vsel %vm233, %v544, %v545
    %v548 = vadd.f32 %v518, %v546
    %s549 = sld [smem:[#allocation8 + $0x29]]
    %v550 = vstv %s549
    %v551 = vmul.f32 %v550, %v528
    %553 = vrot.lane.b32.xlu0 %v551, 127
    %v554 = vpop.permute.xlu0 %553
    %v555 = vrot.slane %v554, 1
    %v556 = vsel %vm233, %v554, %v555
    %v558 = vadd.f32 %v522, %v556
    %s559 = sld [smem:[#allocation8 + $0x39]]
    %v560 = vstv %s559
    %v561 = vmul.f32 %v560, %v528
    %563 = vrot.lane.b32.xlu0 %v561, 127
    %v564 = vpop.permute.xlu0 %563
    %v565 = vrot.slane %v564, 1
    %v566 = vsel %vm233, %v564, %v565
    %v568 = vadd.f32 %v526, %v566
    %v569 = vmul.f32 %v527, %v272
    %s570 = sld [smem:[#allocation8 + $0xa]]
    %v571 = vstv %s570
    %v572 = vmul.f32 %v571, %v569
    %574 = vrot.lane.b32.xlu0 %v572, 126
    %v575 = vpop.permute.xlu0 %574
    %v576 = vrot.slane %v575, 1
    %v577 = vsel %vm282, %v575, %v576
    %v579 = vadd.f32 %v538, %v577
    %s580 = sld [smem:[#allocation8 + $0x1a]]
    %v581 = vstv %s580
    %v582 = vmul.f32 %v581, %v569
    %584 = vrot.lane.b32.xlu0 %v582, 126
    %v585 = vpop.permute.xlu0 %584
    %v586 = vrot.slane %v585, 1
    %v587 = vsel %vm282, %v585, %v586
    %v589 = vadd.f32 %v548, %v587
    %s590 = sld [smem:[#allocation8 + $0x2a]]
    %v591 = vstv %s590
    %v592 = vmul.f32 %v591, %v569
    %594 = vrot.lane.b32.xlu0 %v592, 126
    %v595 = vpop.permute.xlu0 %594
    %v596 = vrot.slane %v595, 1
    %v597 = vsel %vm282, %v595, %v596
    %v599 = vadd.f32 %v558, %v597
    %s600 = sld [smem:[#allocation8 + $0x3a]]
    %v601 = vstv %s600
    %v602 = vmul.f32 %v601, %v569
    %604 = vrot.lane.b32.xlu0 %v602, 126
    %v605 = vpop.permute.xlu0 %604
    %v606 = vrot.slane %v605, 1
    %v607 = vsel %vm282, %v605, %v606
    %v609 = vadd.f32 %v568, %v607
    %v610 = vmul.f32 %v527, %v321
    %s611 = sld [smem:[#allocation8 + $0xb]]
    %v612 = vstv %s611
    %v613 = vmul.f32 %v612, %v610
    %615 = vrot.lane.b32.xlu0 %v613, 112
    %v616 = vpop.permute.xlu0 %615
    %v617 = vrot.slane %v616, 1
    %v618 = vsel %vm331, %v616, %v617
    %v620 = vadd.f32 %v579, %v618
    %s621 = sld [smem:[#allocation8 + $0x1b]]
    %v622 = vstv %s621
    %v623 = vmul.f32 %v622, %v610
    %625 = vrot.lane.b32.xlu0 %v623, 112
    %v626 = vpop.permute.xlu0 %625
    %v627 = vrot.slane %v626, 1
    %v628 = vsel %vm331, %v626, %v627
    %v630 = vadd.f32 %v589, %v628
    %s631 = sld [smem:[#allocation8 + $0x2b]]
    %v632 = vstv %s631
    %v633 = vmul.f32 %v632, %v610
    %635 = vrot.lane.b32.xlu0 %v633, 112
    %v636 = vpop.permute.xlu0 %635
    %v637 = vrot.slane %v636, 1
    %v638 = vsel %vm331, %v636, %v637
    %v640 = vadd.f32 %v599, %v638
    %s641 = sld [smem:[#allocation8 + $0x3b]]
    %v642 = vstv %s641
    %v643 = vmul.f32 %v642, %v610
    %645 = vrot.lane.b32.xlu0 %v643, 112
    %v646 = vpop.permute.xlu0 %645
    %v647 = vrot.slane %v646, 1
    %v648 = vsel %vm331, %v646, %v647
    %v650 = vadd.f32 %v609, %v648
    %s651 = scalar_lea.vmem [#allocation2], 3
    %v652 = vld [vmem:[%s651] ss:$4 sm:$0x3]
    %v653 = vmul.f32 %v652, %v106
    %s654 = sld [smem:[#allocation8 + $0xc]]
    %v655 = vstv %s654
    %v656 = vmul.f32 %v655, %v653
    %v657 = vadd.f32 %v620, %v656
    %s658 = sld [smem:[#allocation8 + $0x1c]]
    %v659 = vstv %s658
    %v660 = vmul.f32 %v659, %v653
    %v661 = vadd.f32 %v630, %v660
    %s662 = sld [smem:[#allocation8 + $0x2c]]
    %v663 = vstv %s662
    %v664 = vmul.f32 %v663, %v653
    %v665 = vadd.f32 %v640, %v664
    %s666 = sld [smem:[#allocation8 + $0x3c]]
    %v667 = vstv %s666
    %v668 = vmul.f32 %v667, %v653
    %v669 = vadd.f32 %v650, %v668
    %v670 = vld [vmem:[%s651] ss:$4 sm:$0x7]
    %v671 = vmul.f32 %v670, %v223
    %s672 = sld [smem:[#allocation8 + $0xd]]
    %v673 = vstv %s672
    %v674 = vmul.f32 %v673, %v671
    %676 = vrot.lane.b32.xlu0 %v674, 127
    %v677 = vpop.permute.xlu0 %676
    %v678 = vrot.slane %v677, 1
    %v679 = vsel %vm233, %v677, %v678
    %v681 = vadd.f32 %v657, %v679
    %s682 = sld [smem:[#allocation8 + $0x1d]]
    %v683 = vstv %s682
    %v684 = vmul.f32 %v683, %v671
    %686 = vrot.lane.b32.xlu0 %v684, 127
    %v687 = vpop.permute.xlu0 %686
    %v688 = vrot.slane %v687, 1
    %v689 = vsel %vm233, %v687, %v688
    %v691 = vadd.f32 %v661, %v689
    %s692 = sld [smem:[#allocation8 + $0x2d]]
    %v693 = vstv %s692
    %v694 = vmul.f32 %v693, %v671
    %696 = vrot.lane.b32.xlu0 %v694, 127
    %v697 = vpop.permute.xlu0 %696
    %v698 = vrot.slane %v697, 1
    %v699 = vsel %vm233, %v697, %v698
    %v701 = vadd.f32 %v665, %v699
    %s702 = sld [smem:[#allocation8 + $0x3d]]
    %v703 = vstv %s702
    %v704 = vmul.f32 %v703, %v671
    %706 = vrot.lane.b32.xlu0 %v704, 127
    %v707 = vpop.permute.xlu0 %706
    %v708 = vrot.slane %v707, 1
    %v709 = vsel %vm233, %v707, %v708
    %v711 = vadd.f32 %v669, %v709
    %v712 = vmul.f32 %v670, %v272
    %s713 = sld [smem:[#allocation8 + $0xe]]
    %v714 = vstv %s713
    %v715 = vmul.f32 %v714, %v712
    %717 = vrot.lane.b32.xlu0 %v715, 126
    %v718 = vpop.permute.xlu0 %717
    %v719 = vrot.slane %v718, 1
    %v720 = vsel %vm282, %v718, %v719
    %v722 = vadd.f32 %v681, %v720
    %s723 = sld [smem:[#allocation8 + $0x1e]]
    %v724 = vstv %s723
    %v725 = vmul.f32 %v724, %v712
    %727 = vrot.lane.b32.xlu0 %v725, 126
    %v728 = vpop.permute.xlu0 %727
    %v729 = vrot.slane %v728, 1
    %v730 = vsel %vm282, %v728, %v729
    %v732 = vadd.f32 %v691, %v730
    %s733 = sld [smem:[#allocation8 + $0x2e]]
    %v734 = vstv %s733
    %v735 = vmul.f32 %v734, %v712
    %737 = vrot.lane.b32.xlu0 %v735, 126
    %v738 = vpop.permute.xlu0 %737
    %v739 = vrot.slane %v738, 1
    %v740 = vsel %vm282, %v738, %v739
    %v742 = vadd.f32 %v701, %v740
    %s743 = sld [smem:[#allocation8 + $0x3e]]
    %v744 = vstv %s743
    %v745 = vmul.f32 %v744, %v712
    %747 = vrot.lane.b32.xlu0 %v745, 126
    %v748 = vpop.permute.xlu0 %747
    %v749 = vrot.slane %v748, 1
    %v750 = vsel %vm282, %v748, %v749
    %v752 = vadd.f32 %v711, %v750
    %v753 = vmul.f32 %v670, %v321
    %s754 = sld [smem:[#allocation8 + $0xf]]
    %v755 = vstv %s754
    %v756 = vmul.f32 %v755, %v753
    %758 = vrot.lane.b32.xlu0 %v756, 112
    %v759 = vpop.permute.xlu0 %758
    %v760 = vrot.slane %v759, 1
    %v761 = vsel %vm331, %v759, %v760
    %v763 = vadd.f32 %v722, %v761
    %s764 = sld [smem:[#allocation8 + $0x1f]]
    %v765 = vstv %s764
    %v766 = vmul.f32 %v765, %v753
    %768 = vrot.lane.b32.xlu0 %v766, 112
    %v769 = vpop.permute.xlu0 %768
    %v770 = vrot.slane %v769, 1
    %v771 = vsel %vm331, %v769, %v770
    %v773 = vadd.f32 %v732, %v771
    %s774 = sld [smem:[#allocation8 + $0x2f]]
    %v775 = vstv %s774
    %v776 = vmul.f32 %v775, %v753
    %778 = vrot.lane.b32.xlu0 %v776, 112
    %v779 = vpop.permute.xlu0 %778
    %v780 = vrot.slane %v779, 1
    %v781 = vsel %vm331, %v779, %v780
    %v783 = vadd.f32 %v742, %v781
    %s784 = sld [smem:[#allocation8 + $0x3f]]
    %v785 = vstv %s784
    %v786 = vmul.f32 %v785, %v753
    %788 = vrot.lane.b32.xlu0 %v786, 112
    %v789 = vpop.permute.xlu0 %788
    %v790 = vrot.slane %v789, 1
    %v791 = vsel %vm331, %v789, %v790
    %v793 = vadd.f32 %v752, %v791
    %v794 = vmax.f32 %v763, 0.0
    %v795 = vlaneseq
    %vm796 = vcmp.ge.s32.totalorder %v795, 0
    %vm797 = vcmp.lt.s32.totalorder %v795, 256
    %vm798 = vmand %vm796, %vm797
    %799 = vst.msk [vmem:[#allocation15] ss:$4 sm:$0x3] %vm798, %v794
    %v800 = vmax.f32 %v773, 0.0
    %s801 = scalar_lea.vmem [#allocation15], 1
    %802 = vst.msk [vmem:[%s801] ss:$4 sm:$0x3] %vm798, %v800
    %v803 = vmax.f32 %v783, 0.0
    %s804 = scalar_lea.vmem [#allocation15], 2
    %805 = vst.msk [vmem:[%s804] ss:$4 sm:$0x3] %vm798, %v803
    %v806 = vmax.f32 %v793, 0.0
    %s807 = scalar_lea.vmem [#allocation15], 3
    %808 = vst.msk [vmem:[%s807] ss:$4 sm:$0x3] %vm798, %v806
    %v809 = vld [vmem:[#allocation12] sm:$0xff]
    %v810 = vld [vmem:[#allocation12 + $0x8] sm:$0xf]
    %s811 = sld [smem:[#allocation3 + $0x80]]
    %v812 = vld [vmem:[#allocation11] sm:$0xff]
    %v813 = vld [vmem:[#allocation11 + $0x8] sm:$0xf]
    %v814 = vstv %s811
    %v815 = vmul.f32 %v814, %v812
    %v816 = vmul.f32 %v814, %v813
    %v817 = vadd.f32 %v809, %v815
    %v818 = vadd.f32 %v810, %v816
    %s819 = sld [smem:[#allocation3 + $0x81]]
    %v820 = vld [vmem:[%s124] sm:$0xff]
    %v821 = vld [vmem:[%s124 + $0x8] sm:$0xf]
    %v822 = vstv %s819
    %v823 = vmul.f32 %v822, %v820
    %v824 = vmul.f32 %v822, %v821
    %v825 = vadd.f32 %v817, %v823
    %v826 = vadd.f32 %v818, %v824
    %s827 = sld [smem:[#allocation3 + $0x82]]
    %v828 = vld [vmem:[%s133] sm:$0xff]
    %v829 = vld [vmem:[%s133 + $0x8] sm:$0xf]
    %v830 = vstv %s827
    %v831 = vmul.f32 %v830, %v828
    %v832 = vmul.f32 %v830, %v829
    %v833 = vadd.f32 %v825, %v831
    %v834 = vadd.f32 %v826, %v832
    %s835 = sld [smem:[#allocation3 + $0x83]]
    %v836 = vld [vmem:[%s142] sm:$0xff]
    %v837 = vld [vmem:[%s142 + $0x8] sm:$0xf]
    %v838 = vstv %s835
    %v839 = vmul.f32 %v838, %v836
    %v840 = vmul.f32 %v838, %v837
    %v841 = vadd.f32 %v833, %v839
    %v842 = vadd.f32 %v834, %v840
    %s843 = sld [smem:[#allocation3 + $0x84]]
    %v844 = vld [vmem:[%s151] sm:$0xff]
    %v845 = vld [vmem:[%s151 + $0x8] sm:$0xf]
    %v846 = vstv %s843
    %v847 = vmul.f32 %v846, %v844
    %v848 = vmul.f32 %v846, %v845
    %v849 = vadd.f32 %v841, %v847
    %v850 = vadd.f32 %v842, %v848
    %s851 = sld [smem:[#allocation3 + $0x85]]
    %v852 = vld [vmem:[%s160] sm:$0xff]
    %v853 = vld [vmem:[%s160 + $0x8] sm:$0xf]
    %v854 = vstv %s851
    %v855 = vmul.f32 %v854, %v852
    %v856 = vmul.f32 %v854, %v853
    %v857 = vadd.f32 %v849, %v855
    %v858 = vadd.f32 %v850, %v856
    %s859 = sld [smem:[#allocation3 + $0x86]]
    %v860 = vld [vmem:[%s169] sm:$0xff]
    %v861 = vld [vmem:[%s169 + $0x8] sm:$0xf]
    %v862 = vstv %s859
    %v863 = vmul.f32 %v862, %v860
    %v864 = vmul.f32 %v862, %v861
    %v865 = vadd.f32 %v857, %v863
    %v866 = vadd.f32 %v858, %v864
    %s867 = sld [smem:[#allocation3 + $0x87]]
    %v868 = vld [vmem:[%s178] sm:$0xff]
    %v869 = vld [vmem:[%s178 + $0x8] sm:$0xf]
    %v870 = vstv %s867
    %v871 = vmul.f32 %v870, %v868
    %v872 = vmul.f32 %v870, %v869
    %v873 = vadd.f32 %v865, %v871
    %v874 = vadd.f32 %v866, %v872
    %v875 = vtanh.pop %v873
    %v876 = vtanh.pop %v874
    %877 = vst [vmem:[#allocation2] sm:$0xff] %v875
    %878 = vst.msk [vmem:[#allocation2 + $0x8] sm:$0xf] %vm189, %v876
    %s879 = sld [smem:[#allocation10]]
    %v880 = vstv %s879
    %s881 = sld [smem:[#allocation10 + $0x1]]
    %v882 = vstv %s881
    %s883 = sld [smem:[#allocation10 + $0x2]]
    %v884 = vstv %s883
    %s885 = sld [smem:[#allocation10 + $0x3]]
    %v886 = vstv %s885
    %v887 = vld [vmem:[#allocation2] ss:$4 sm:$0x3]
    %v888 = vmul.f32 %v887, %v106
    %s889 = sld [smem:[#allocation8]]
    %v890 = vstv %s889
    %v891 = vmul.f32 %v890, %v888
    %v892 = vadd.f32 %v880, %v891
    %s893 = sld [smem:[#allocation8 + $0x10]]
    %v894 = vstv %s893
    %v895 = vmul.f32 %v894, %v888
    %v896 = vadd.f32 %v882, %v895
    %s897 = sld [smem:[#allocation8 + $0x20]]
    %v898 = vstv %s897
    %v899 = vmul.f32 %v898, %v888
    %v900 = vadd.f32 %v884, %v899
    %s901 = sld [smem:[#allocation8 + $0x30]]
    %v902 = vstv %s901
    %v903 = vmul.f32 %v902, %v888
    %v904 = vadd.f32 %v886, %v903
    %v905 = vld [vmem:[#allocation2] ss:$4 sm:$0x7]
    %v906 = vmul.f32 %v905, %v223
    %s907 = sld [smem:[#allocation8 + $0x1]]
    %v908 = vstv %s907
    %v909 = vmul.f32 %v908, %v906
    %911 = vrot.lane.b32.xlu0 %v909, 127
    %v912 = vpop.permute.xlu0 %911
    %v913 = vrot.slane %v912, 1
    %v914 = vsel %vm233, %v912, %v913
    %v916 = vadd.f32 %v892, %v914
    %s917 = sld [smem:[#allocation8 + $0x11]]
    %v918 = vstv %s917
    %v919 = vmul.f32 %v918, %v906
    %921 = vrot.lane.b32.xlu0 %v919, 127
    %v922 = vpop.permute.xlu0 %921
    %v923 = vrot.slane %v922, 1
    %v924 = vsel %vm233, %v922, %v923
    %v926 = vadd.f32 %v896, %v924
    %s927 = sld [smem:[#allocation8 + $0x21]]
    %v928 = vstv %s927
    %v929 = vmul.f32 %v928, %v906
    %931 = vrot.lane.b32.xlu0 %v929, 127
    %v932 = vpop.permute.xlu0 %931
    %v933 = vrot.slane %v932, 1
    %v934 = vsel %vm233, %v932, %v933
    %v936 = vadd.f32 %v900, %v934
    %s937 = sld [smem:[#allocation8 + $0x31]]
    %v938 = vstv %s937
    %v939 = vmul.f32 %v938, %v906
    %941 = vrot.lane.b32.xlu0 %v939, 127
    %v942 = vpop.permute.xlu0 %941
    %v943 = vrot.slane %v942, 1
    %v944 = vsel %vm233, %v942, %v943
    %v946 = vadd.f32 %v904, %v944
    %v947 = vmul.f32 %v905, %v272
    %s948 = sld [smem:[#allocation8 + $0x2]]
    %v949 = vstv %s948
    %v950 = vmul.f32 %v949, %v947
    %952 = vrot.lane.b32.xlu0 %v950, 126
    %v953 = vpop.permute.xlu0 %952
    %v954 = vrot.slane %v953, 1
    %v955 = vsel %vm282, %v953, %v954
    %v957 = vadd.f32 %v916, %v955
    %s958 = sld [smem:[#allocation8 + $0x12]]
    %v959 = vstv %s958
    %v960 = vmul.f32 %v959, %v947
    %962 = vrot.lane.b32.xlu0 %v960, 126
    %v963 = vpop.permute.xlu0 %962
    %v964 = vrot.slane %v963, 1
    %v965 = vsel %vm282, %v963, %v964
    %v967 = vadd.f32 %v926, %v965
    %s968 = sld [smem:[#allocation8 + $0x22]]
    %v969 = vstv %s968
    %v970 = vmul.f32 %v969, %v947
    %972 = vrot.lane.b32.xlu0 %v970, 126
    %v973 = vpop.permute.xlu0 %972
    %v974 = vrot.slane %v973, 1
    %v975 = vsel %vm282, %v973, %v974
    %v977 = vadd.f32 %v936, %v975
    %s978 = sld [smem:[#allocation8 + $0x32]]
    %v979 = vstv %s978
    %v980 = vmul.f32 %v979, %v947
    %982 = vrot.lane.b32.xlu0 %v980, 126
    %v983 = vpop.permute.xlu0 %982
    %v984 = vrot.slane %v983, 1
    %v985 = vsel %vm282, %v983, %v984
    %v987 = vadd.f32 %v946, %v985
    %v988 = vmul.f32 %v905, %v321
    %s989 = sld [smem:[#allocation8 + $0x3]]
    %v990 = vstv %s989
    %v991 = vmul.f32 %v990, %v988
    %993 = vrot.lane.b32.xlu0 %v991, 112
    %v994 = vpop.permute.xlu0 %993
    %v995 = vrot.slane %v994, 1
    %v996 = vsel %vm331, %v994, %v995
    %v998 = vadd.f32 %v957, %v996
    %s999 = sld [smem:[#allocation8 + $0x13]]
    %v1000 = vstv %s999
    %v1001 = vmul.f32 %v1000, %v988
    %1003 = vrot.lane.b32.xlu0 %v1001, 112
    %v1004 = vpop.permute.xlu0 %1003
    %v1005 = vrot.slane %v1004, 1
    %v1006 = vsel %vm331, %v1004, %v1005
    %v1008 = vadd.f32 %v967, %v1006
    %s1009 = sld [smem:[#allocation8 + $0x23]]
    %v1010 = vstv %s1009
    %v1011 = vmul.f32 %v1010, %v988
    %1013 = vrot.lane.b32.xlu0 %v1011, 112
    %v1014 = vpop.permute.xlu0 %1013
    %v1015 = vrot.slane %v1014, 1
    %v1016 = vsel %vm331, %v1014, %v1015
    %v1018 = vadd.f32 %v977, %v1016
    %s1019 = sld [smem:[#allocation8 + $0x33]]
    %v1020 = vstv %s1019
    %v1021 = vmul.f32 %v1020, %v988
    %1023 = vrot.lane.b32.xlu0 %v1021, 112
    %v1024 = vpop.permute.xlu0 %1023
    %v1025 = vrot.slane %v1024, 1
    %v1026 = vsel %vm331, %v1024, %v1025
    %v1028 = vadd.f32 %v987, %v1026
    %v1029 = vld [vmem:[%s365] ss:$4 sm:$0x3]
    %v1030 = vmul.f32 %v1029, %v106
    %s1031 = sld [smem:[#allocation8 + $0x4]]
    %v1032 = vstv %s1031
    %v1033 = vmul.f32 %v1032, %v1030
    %v1034 = vadd.f32 %v998, %v1033
    %s1035 = sld [smem:[#allocation8 + $0x14]]
    %v1036 = vstv %s1035
    %v1037 = vmul.f32 %v1036, %v1030
    %v1038 = vadd.f32 %v1008, %v1037
    %s1039 = sld [smem:[#allocation8 + $0x24]]
    %v1040 = vstv %s1039
    %v1041 = vmul.f32 %v1040, %v1030
    %v1042 = vadd.f32 %v1018, %v1041
    %s1043 = sld [smem:[#allocation8 + $0x34]]
    %v1044 = vstv %s1043
    %v1045 = vmul.f32 %v1044, %v1030
    %v1046 = vadd.f32 %v1028, %v1045
    %v1047 = vld [vmem:[%s365] ss:$4 sm:$0x7]
    %v1048 = vmul.f32 %v1047, %v223
    %s1049 = sld [smem:[#allocation8 + $0x5]]
    %v1050 = vstv %s1049
    %v1051 = vmul.f32 %v1050, %v1048
    %1053 = vrot.lane.b32.xlu0 %v1051, 127
    %v1054 = vpop.permute.xlu0 %1053
    %v1055 = vrot.slane %v1054, 1
    %v1056 = vsel %vm233, %v1054, %v1055
    %v1058 = vadd.f32 %v1034, %v1056
    %s1059 = sld [smem:[#allocation8 + $0x15]]
    %v1060 = vstv %s1059
    %v1061 = vmul.f32 %v1060, %v1048
    %1063 = vrot.lane.b32.xlu0 %v1061, 127
    %v1064 = vpop.permute.xlu0 %1063
    %v1065 = vrot.slane %v1064, 1
    %v1066 = vsel %vm233, %v1064, %v1065
    %v1068 = vadd.f32 %v1038, %v1066
    %s1069 = sld [smem:[#allocation8 + $0x25]]
    %v1070 = vstv %s1069
    %v1071 = vmul.f32 %v1070, %v1048
    %1073 = vrot.lane.b32.xlu0 %v1071, 127
    %v1074 = vpop.permute.xlu0 %1073
    %v1075 = vrot.slane %v1074, 1
    %v1076 = vsel %vm233, %v1074, %v1075
    %v1078 = vadd.f32 %v1042, %v1076
    %s1079 = sld [smem:[#allocation8 + $0x35]]
    %v1080 = vstv %s1079
    %v1081 = vmul.f32 %v1080, %v1048
    %1083 = vrot.lane.b32.xlu0 %v1081, 127
    %v1084 = vpop.permute.xlu0 %1083
    %v1085 = vrot.slane %v1084, 1
    %v1086 = vsel %vm233, %v1084, %v1085
    %v1088 = vadd.f32 %v1046, %v1086
    %v1089 = vmul.f32 %v1047, %v272
    %s1090 = sld [smem:[#allocation8 + $0x6]]
    %v1091 = vstv %s1090
    %v1092 = vmul.f32 %v1091, %v1089
    %1094 = vrot.lane.b32.xlu0 %v1092, 126
    %v1095 = vpop.permute.xlu0 %1094
    %v1096 = vrot.slane %v1095, 1
    %v1097 = vsel %vm282, %v1095, %v1096
    %v1099 = vadd.f32 %v1058, %v1097
    %s1100 = sld [smem:[#allocation8 + $0x16]]
    %v1101 = vstv %s1100
    %v1102 = vmul.f32 %v1101, %v1089
    %1104 = vrot.lane.b32.xlu0 %v1102, 126
    %v1105 = vpop.permute.xlu0 %1104
    %v1106 = vrot.slane %v1105, 1
    %v1107 = vsel %vm282, %v1105, %v1106
    %v1109 = vadd.f32 %v1068, %v1107
    %s1110 = sld [smem:[#allocation8 + $0x26]]
    %v1111 = vstv %s1110
    %v1112 = vmul.f32 %v1111, %v1089
    %1114 = vrot.lane.b32.xlu0 %v1112, 126
    %v1115 = vpop.permute.xlu0 %1114
    %v1116 = vrot.slane %v1115, 1
    %v1117 = vsel %vm282, %v1115, %v1116
    %v1119 = vadd.f32 %v1078, %v1117
    %s1120 = sld [smem:[#allocation8 + $0x36]]
    %v1121 = vstv %s1120
    %v1122 = vmul.f32 %v1121, %v1089
    %1124 = vrot.lane.b32.xlu0 %v1122, 126
    %v1125 = vpop.permute.xlu0 %1124
    %v1126 = vrot.slane %v1125, 1
    %v1127 = vsel %vm282, %v1125, %v1126
    %v1129 = vadd.f32 %v1088, %v1127
    %v1130 = vmul.f32 %v1047, %v321
    %s1131 = sld [smem:[#allocation8 + $0x7]]
    %v1132 = vstv %s1131
    %v1133 = vmul.f32 %v1132, %v1130
    %1135 = vrot.lane.b32.xlu0 %v1133, 112
    %v1136 = vpop.permute.xlu0 %1135
    %v1137 = vrot.slane %v1136, 1
    %v1138 = vsel %vm331, %v1136, %v1137
    %v1140 = vadd.f32 %v1099, %v1138
    %s1141 = sld [smem:[#allocation8 + $0x17]]
    %v1142 = vstv %s1141
    %v1143 = vmul.f32 %v1142, %v1130
    %1145 = vrot.lane.b32.xlu0 %v1143, 112
    %v1146 = vpop.permute.xlu0 %1145
    %v1147 = vrot.slane %v1146, 1
    %v1148 = vsel %vm331, %v1146, %v1147
    %v1150 = vadd.f32 %v1109, %v1148
    %s1151 = sld [smem:[#allocation8 + $0x27]]
    %v1152 = vstv %s1151
    %v1153 = vmul.f32 %v1152, %v1130
    %1155 = vrot.lane.b32.xlu0 %v1153, 112
    %v1156 = vpop.permute.xlu0 %1155
    %v1157 = vrot.slane %v1156, 1
    %v1158 = vsel %vm331, %v1156, %v1157
    %v1160 = vadd.f32 %v1119, %v1158
    %s1161 = sld [smem:[#allocation8 + $0x37]]
    %v1162 = vstv %s1161
    %v1163 = vmul.f32 %v1162, %v1130
    %1165 = vrot.lane.b32.xlu0 %v1163, 112
    %v1166 = vpop.permute.xlu0 %1165
    %v1167 = vrot.slane %v1166, 1
    %v1168 = vsel %vm331, %v1166, %v1167
    %v1170 = vadd.f32 %v1129, %v1168
    %v1171 = vld [vmem:[%s508] ss:$4 sm:$0x3]
    %v1172 = vmul.f32 %v1171, %v106
    %s1173 = sld [smem:[#allocation8 + $0x8]]
    %v1174 = vstv %s1173
    %v1175 = vmul.f32 %v1174, %v1172
    %v1176 = vadd.f32 %v1140, %v1175
    %s1177 = sld [smem:[#allocation8 + $0x18]]
    %v1178 = vstv %s1177
    %v1179 = vmul.f32 %v1178, %v1172
    %v1180 = vadd.f32 %v1150, %v1179
    %s1181 = sld [smem:[#allocation8 + $0x28]]
    %v1182 = vstv %s1181
    %v1183 = vmul.f32 %v1182, %v1172
    %v1184 = vadd.f32 %v1160, %v1183
    %s1185 = sld [smem:[#allocation8 + $0x38]]
    %v1186 = vstv %s1185
    %v1187 = vmul.f32 %v1186, %v1172
    %v1188 = vadd.f32 %v1170, %v1187
    %v1189 = vld [vmem:[%s508] ss:$4 sm:$0x7]
    %v1190 = vmul.f32 %v1189, %v223
    %s1191 = sld [smem:[#allocation8 + $0x9]]
    %v1192 = vstv %s1191
    %v1193 = vmul.f32 %v1192, %v1190
    %1195 = vrot.lane.b32.xlu0 %v1193, 127
    %v1196 = vpop.permute.xlu0 %1195
    %v1197 = vrot.slane %v1196, 1
    %v1198 = vsel %vm233, %v1196, %v1197
    %v1200 = vadd.f32 %v1176, %v1198
    %s1201 = sld [smem:[#allocation8 + $0x19]]
    %v1202 = vstv %s1201
    %v1203 = vmul.f32 %v1202, %v1190
    %1205 = vrot.lane.b32.xlu0 %v1203, 127
    %v1206 = vpop.permute.xlu0 %1205
    %v1207 = vrot.slane %v1206, 1
    %v1208 = vsel %vm233, %v1206, %v1207
    %v1210 = vadd.f32 %v1180, %v1208
    %s1211 = sld [smem:[#allocation8 + $0x29]]
    %v1212 = vstv %s1211
    %v1213 = vmul.f32 %v1212, %v1190
    %1215 = vrot.lane.b32.xlu0 %v1213, 127
    %v1216 = vpop.permute.xlu0 %1215
    %v1217 = vrot.slane %v1216, 1
    %v1218 = vsel %vm233, %v1216, %v1217
    %v1220 = vadd.f32 %v1184, %v1218
    %s1221 = sld [smem:[#allocation8 + $0x39]]
    %v1222 = vstv %s1221
    %v1223 = vmul.f32 %v1222, %v1190
    %1225 = vrot.lane.b32.xlu0 %v1223, 127
    %v1226 = vpop.permute.xlu0 %1225
    %v1227 = vrot.slane %v1226, 1
    %v1228 = vsel %vm233, %v1226, %v1227
    %v1230 = vadd.f32 %v1188, %v1228
    %v1231 = vmul.f32 %v1189, %v272
    %s1232 = sld [smem:[#allocation8 + $0xa]]
    %v1233 = vstv %s1232
    %v1234 = vmul.f32 %v1233, %v1231
    %1236 = vrot.lane.b32.xlu0 %v1234, 126
    %v1237 = vpop.permute.xlu0 %1236
    %v1238 = vrot.slane %v1237, 1
    %v1239 = vsel %vm282, %v1237, %v1238
    %v1241 = vadd.f32 %v1200, %v1239
    %s1242 = sld [smem:[#allocation8 + $0x1a]]
    %v1243 = vstv %s1242
    %v1244 = vmul.f32 %v1243, %v1231
    %1246 = vrot.lane.b32.xlu0 %v1244, 126
    %v1247 = vpop.permute.xlu0 %1246
    %v1248 = vrot.slane %v1247, 1
    %v1249 = vsel %vm282, %v1247, %v1248
    %v1251 = vadd.f32 %v1210, %v1249
    %s1252 = sld [smem:[#allocation8 + $0x2a]]
    %v1253 = vstv %s1252
    %v1254 = vmul.f32 %v1253, %v1231
    %1256 = vrot.lane.b32.xlu0 %v1254, 126
    %v1257 = vpop.permute.xlu0 %1256
    %v1258 = vrot.slane %v1257, 1
    %v1259 = vsel %vm282, %v1257, %v1258
    %v1261 = vadd.f32 %v1220, %v1259
    %s1262 = sld [smem:[#allocation8 + $0x3a]]
    %v1263 = vstv %s1262
    %v1264 = vmul.f32 %v1263, %v1231
    %1266 = vrot.lane.b32.xlu0 %v1264, 126
    %v1267 = vpop.permute.xlu0 %1266
    %v1268 = vrot.slane %v1267, 1
    %v1269 = vsel %vm282, %v1267, %v1268
    %v1271 = vadd.f32 %v1230, %v1269
    %v1272 = vmul.f32 %v1189, %v321
    %s1273 = sld [smem:[#allocation8 + $0xb]]
    %v1274 = vstv %s1273
    %v1275 = vmul.f32 %v1274, %v1272
    %1277 = vrot.lane.b32.xlu0 %v1275, 112
    %v1278 = vpop.permute.xlu0 %1277
    %v1279 = vrot.slane %v1278, 1
    %v1280 = vsel %vm331, %v1278, %v1279
    %v1282 = vadd.f32 %v1241, %v1280
    %s1283 = sld [smem:[#allocation8 + $0x1b]]
    %v1284 = vstv %s1283
    %v1285 = vmul.f32 %v1284, %v1272
    %1287 = vrot.lane.b32.xlu0 %v1285, 112
    %v1288 = vpop.permute.xlu0 %1287
    %v1289 = vrot.slane %v1288, 1
    %v1290 = vsel %vm331, %v1288, %v1289
    %v1292 = vadd.f32 %v1251, %v1290
    %s1293 = sld [smem:[#allocation8 + $0x2b]]
    %v1294 = vstv %s1293
    %v1295 = vmul.f32 %v1294, %v1272
    %1297 = vrot.lane.b32.xlu0 %v1295, 112
    %v1298 = vpop.permute.xlu0 %1297
    %v1299 = vrot.slane %v1298, 1
    %v1300 = vsel %vm331, %v1298, %v1299
    %v1302 = vadd.f32 %v1261, %v1300
    %s1303 = sld [smem:[#allocation8 + $0x3b]]
    %v1304 = vstv %s1303
    %v1305 = vmul.f32 %v1304, %v1272
    %1307 = vrot.lane.b32.xlu0 %v1305, 112
    %v1308 = vpop.permute.xlu0 %1307
    %v1309 = vrot.slane %v1308, 1
    %v1310 = vsel %vm331, %v1308, %v1309
    %v1312 = vadd.f32 %v1271, %v1310
    %v1313 = vld [vmem:[%s651] ss:$4 sm:$0x3]
    %v1314 = vmul.f32 %v1313, %v106
    %s1315 = sld [smem:[#allocation8 + $0xc]]
    %v1316 = vstv %s1315
    %v1317 = vmul.f32 %v1316, %v1314
    %v1318 = vadd.f32 %v1282, %v1317
    %s1319 = sld [smem:[#allocation8 + $0x1c]]
    %v1320 = vstv %s1319
    %v1321 = vmul.f32 %v1320, %v1314
    %v1322 = vadd.f32 %v1292, %v1321
    %s1323 = sld [smem:[#allocation8 + $0x2c]]
    %v1324 = vstv %s1323
    %v1325 = vmul.f32 %v1324, %v1314
    %v1326 = vadd.f32 %v1302, %v1325
    %s1327 = sld [smem:[#allocation8 + $0x3c]]
    %v1328 = vstv %s1327
    %v1329 = vmul.f32 %v1328, %v1314
    %v1330 = vadd.f32 %v1312, %v1329
    %v1331 = vld [vmem:[%s651] ss:$4 sm:$0x7]
    %v1332 = vmul.f32 %v1331, %v223
    %s1333 = sld [smem:[#allocation8 + $0xd]]
    %v1334 = vstv %s1333
    %v1335 = vmul.f32 %v1334, %v1332
    %1337 = vrot.lane.b32.xlu0 %v1335, 127
    %v1338 = vpop.permute.xlu0 %1337
    %v1339 = vrot.slane %v1338, 1
    %v1340 = vsel %vm233, %v1338, %v1339
    %v1342 = vadd.f32 %v1318, %v1340
    %s1343 = sld [smem:[#allocation8 + $0x1d]]
    %v1344 = vstv %s1343
    %v1345 = vmul.f32 %v1344, %v1332
    %1347 = vrot.lane.b32.xlu0 %v1345, 127
    %v1348 = vpop.permute.xlu0 %1347
    %v1349 = vrot.slane %v1348, 1
    %v1350 = vsel %vm233, %v1348, %v1349
    %v1352 = vadd.f32 %v1322, %v1350
    %s1353 = sld [smem:[#allocation8 + $0x2d]]
    %v1354 = vstv %s1353
    %v1355 = vmul.f32 %v1354, %v1332
    %1357 = vrot.lane.b32.xlu0 %v1355, 127
    %v1358 = vpop.permute.xlu0 %1357
    %v1359 = vrot.slane %v1358, 1
    %v1360 = vsel %vm233, %v1358, %v1359
    %v1362 = vadd.f32 %v1326, %v1360
    %s1363 = sld [smem:[#allocation8 + $0x3d]]
    %v1364 = vstv %s1363
    %v1365 = vmul.f32 %v1364, %v1332
    %1367 = vrot.lane.b32.xlu0 %v1365, 127
    %v1368 = vpop.permute.xlu0 %1367
    %v1369 = vrot.slane %v1368, 1
    %v1370 = vsel %vm233, %v1368, %v1369
    %v1372 = vadd.f32 %v1330, %v1370
    %v1373 = vmul.f32 %v1331, %v272
    %s1374 = sld [smem:[#allocation8 + $0xe]]
    %v1375 = vstv %s1374
    %v1376 = vmul.f32 %v1375, %v1373
    %1378 = vrot.lane.b32.xlu0 %v1376, 126
    %v1379 = vpop.permute.xlu0 %1378
    %v1380 = vrot.slane %v1379, 1
    %v1381 = vsel %vm282, %v1379, %v1380
    %v1383 = vadd.f32 %v1342, %v1381
    %s1384 = sld [smem:[#allocation8 + $0x1e]]
    %v1385 = vstv %s1384
    %v1386 = vmul.f32 %v1385, %v1373
    %1388 = vrot.lane.b32.xlu0 %v1386, 126
    %v1389 = vpop.permute.xlu0 %1388
    %v1390 = vrot.slane %v1389, 1
    %v1391 = vsel %vm282, %v1389, %v1390
    %v1393 = vadd.f32 %v1352, %v1391
    %s1394 = sld [smem:[#allocation8 + $0x2e]]
    %v1395 = vstv %s1394
    %v1396 = vmul.f32 %v1395, %v1373
    %1398 = vrot.lane.b32.xlu0 %v1396, 126
    %v1399 = vpop.permute.xlu0 %1398
    %v1400 = vrot.slane %v1399, 1
    %v1401 = vsel %vm282, %v1399, %v1400
    %v1403 = vadd.f32 %v1362, %v1401
    %s1404 = sld [smem:[#allocation8 + $0x3e]]
    %v1405 = vstv %s1404
    %v1406 = vmul.f32 %v1405, %v1373
    %1408 = vrot.lane.b32.xlu0 %v1406, 126
    %v1409 = vpop.permute.xlu0 %1408
    %v1410 = vrot.slane %v1409, 1
    %v1411 = vsel %vm282, %v1409, %v1410
    %v1413 = vadd.f32 %v1372, %v1411
    %v1414 = vmul.f32 %v1331, %v321
    %s1415 = sld [smem:[#allocation8 + $0xf]]
    %v1416 = vstv %s1415
    %v1417 = vmul.f32 %v1416, %v1414
    %1419 = vrot.lane.b32.xlu0 %v1417, 112
    %v1420 = vpop.permute.xlu0 %1419
    %v1421 = vrot.slane %v1420, 1
    %v1422 = vsel %vm331, %v1420, %v1421
    %v1424 = vadd.f32 %v1383, %v1422
    %s1425 = sld [smem:[#allocation8 + $0x1f]]
    %v1426 = vstv %s1425
    %v1427 = vmul.f32 %v1426, %v1414
    %1429 = vrot.lane.b32.xlu0 %v1427, 112
    %v1430 = vpop.permute.xlu0 %1429
    %v1431 = vrot.slane %v1430, 1
    %v1432 = vsel %vm331, %v1430, %v1431
    %v1434 = vadd.f32 %v1393, %v1432
    %s1435 = sld [smem:[#allocation8 + $0x2f]]
    %v1436 = vstv %s1435
    %v1437 = vmul.f32 %v1436, %v1414
    %1439 = vrot.lane.b32.xlu0 %v1437, 112
    %v1440 = vpop.permute.xlu0 %1439
    %v1441 = vrot.slane %v1440, 1
    %v1442 = vsel %vm331, %v1440, %v1441
    %v1444 = vadd.f32 %v1403, %v1442
    %s1445 = sld [smem:[#allocation8 + $0x3f]]
    %v1446 = vstv %s1445
    %v1447 = vmul.f32 %v1446, %v1414
    %1449 = vrot.lane.b32.xlu0 %v1447, 112
    %v1450 = vpop.permute.xlu0 %1449
    %v1451 = vrot.slane %v1450, 1
    %v1452 = vsel %vm331, %v1450, %v1451
    %v1454 = vadd.f32 %v1413, %v1452
    %v1455 = vmax.f32 %v1424, 0.0
    %s1456 = scalar_lea.vmem [#allocation15], 8
    %1457 = vst.msk [vmem:[%s1456] ss:$4 sm:$0x3] %vm798, %v1455
    %v1458 = vmax.f32 %v1434, 0.0
    %s1459 = scalar_lea.vmem %s1456, 1 [#allocation15]
    %1460 = vst.msk [vmem:[%s1459] ss:$4 sm:$0x3] %vm798, %v1458
    %v1461 = vmax.f32 %v1444, 0.0
    %s1462 = scalar_lea.vmem %s1456, 2 [#allocation15]
    %1463 = vst.msk [vmem:[%s1462] ss:$4 sm:$0x3] %vm798, %v1461
    %v1464 = vmax.f32 %v1454, 0.0
    %s1465 = scalar_lea.vmem %s1456, 3 [#allocation15]
    %1466 = vst.msk [vmem:[%s1465] ss:$4 sm:$0x3] %vm798, %v1464
    // Predicated region
    $region50: #{tpu_custom_call.1} parent=1 // pred_check
      _
    $region51: #{tpu_custom_call.1} parent=1 // pred_check_branch
      %1468 = sbr.rel (0) target = $region53
    $region52: #{tpu_custom_call.1} parent=1 // pred_region
      %1470 = vsyncadd [#allocation5], 0
      %s1471 = sshll.u32 [#allocation15], 4
      %s1472 = int_to_ptr.vmem [resolvable:$true] %s1471
      %s1473 = sshll.u32 %s6, 4
      %s1474 = int_to_ptr.hbm [resolvable:$true] %s1473
      %1479 = dma.vmem_to_hbm [thread:$0]  %s1472, 256, %s1474, [#allocation5], 128, 128, 8
    $region53: #{tpu_custom_call.1} parent=1 // pred_fallthru
      _
    // Predicated region
    $region54: #{tpu_custom_call.1} parent=1 // pred_check
      _
    $region55: #{tpu_custom_call.1} parent=1 // pred_check_branch
      %1481 = sbr.rel (0) target = $region57
    $region56: #{tpu_custom_call.1} parent=1 // pred_region
      %1483 = dma.done [#allocation5], 256
    $region57: #{tpu_custom_call.1} parent=1 // pred_fallthru
      _
    %1484 = vsyncpa [#allocation4], 1
    %1485 = vsyncpa [#allocation13], 1
    %1486 = vsyncpa [#allocation5], 1
    %1487 = vsyncpa [#allocation6], 1
    %1488 = vsyncpa [#allocation9], 1
    %1489 = vsyncpa [#allocation7], 1

</llo_original>
